<compile_context>
chip_gen: v7x
topology: tpu7x:2x2x1
jax: 0.10.0
libtpu: 0.0.40
codegen_flags: <defaults>
</compile_context>

<pallas_src>
import jax
import jax.numpy as jnp
from jax.experimental import pallas as pl
from jax.experimental.pallas import tpu as pltpu

# Lane guard (left/right zero pad of the flattened H*W axis).  128 keeps the
# image interior lane-tile aligned; it must be >= d*(W+1) for the largest
# dilation so vertically out-of-bounds taps land inside the zero guard.
_GUARD = 128

# MXU operand dtype (see TODO above).
_MXU_DTYPE = jnp.float32


def _make_kernel(H, W, Cin, Cmid, Cout, d1, d2, add_residual, b_tile):
    HW = H * W
    G = _GUARD
    L = 2 * G + HW
    taps = [(ty, tx) for ty in range(3) for tx in range(3)]

    def conv3x3(src, w_ref, m_ref, d, cin):
        """src: (cin, L) value with zero guards. Returns (cout, HW) f32."""
        acc = None
        for t, (ty, tx) in enumerate(taps):
            off = G + (ty - 1) * d * W + (tx - 1) * d
            xs = src[:, off:off + HW]                    # lane-dense slice
            if tx != 1:                                  # horizontal OOB mask
                xs = xs * m_ref[t:t + 1, :]
            wt = w_ref[:, t * cin:(t + 1) * cin].astype(_MXU_DTYPE)
            part = jnp.dot(wt, xs.astype(_MXU_DTYPE),
                           preferred_element_type=jnp.float32)
            acc = part if acc is None else acc + part
        return acc

    def kernel(x_ref, w1_ref, b1_ref, m1_ref, w2_ref, b2_ref, m2_ref,
               o_ref, y1c_ref):
        # Zero only the guard strips of the y1 canvas (interior is fully
        # overwritten below).  Unconditional -> safe under megacore sharding.
        y1c_ref[:, :G] = jnp.zeros((Cmid, G), jnp.float32)
        y1c_ref[:, G + HW:] = jnp.zeros((Cmid, L - G - HW), jnp.float32)

        for b in range(b_tile):                          # static batch-in-step
            xb = x_ref[b]                                # (Cin, L)
            # ---- Conv1 (dilation d1), BN1 scale folded into w1 ------------
            y1 = conv3x3(xb, w1_ref, m1_ref, d1, Cin) + b1_ref[...]
            y1c_ref[:, G:G + HW] = y1                    # aligned dense store
            # ---- Conv2 (dilation d2), BN2 scale folded into w2 ------------
            y1c = y1c_ref[...]                           # (Cmid, L)
            y2 = conv3x3(y1c, w2_ref, m2_ref, d2, Cmid) + b2_ref[...]
            # ---- shortcut + SiLU (only in the residual branch, per spec) --
            if add_residual:
                y2 = y2 + xb[:, G:G + HW]
                y2 = y2 * jax.nn.sigmoid(y2)
            o_ref[b] = y2.astype(o_ref.dtype)            # (Cout, HW) = NCHW

    return kernel


def dilated_bottleneck_pallas(x_nchw, params, *, d1=2, d2=3, shortcut=True,
                              images_per_step=1):
    """Full DilatedBottleneck forward.  NCHW in / NCHW out."""
    N, Cin, H, W = x_nchw.shape
    w1 = params["w1"]                        # (3, 3, Cin,  Cmid)  HWIO
    w2 = params["w2"]                        # (3, 3, Cmid, Cout)  HWIO
    Cmid, Cout = w1.shape[-1], w2.shape[-1]
    add = bool(shortcut and Cin == Cout)

    HW = H * W
    G = _GUARD
    L = 2 * G + HW
    bt = images_per_step
    assert N % bt == 0, "batch must divide images_per_step"
    assert G >= max(d1, d2) * (W + 1), "guard too small for this dilation"

    # Guard-padded, flattened input: (N, Cin, G + H*W + G).  Pure layout
    # plumbing; the pipeline DMA brings it in per grid step.
    x_pad = jnp.pad(x_nchw.reshape(N, Cin, HW).astype(jnp.float32),
                    ((0, 0), (0, 0), (G, G)))

    # Weights as (Cout, tap*Cin) with the BN scale folded in (review item).
    s1 = params["s1"].astype(jnp.float32)
    s2 = params["s2"].astype(jnp.float32)
    w1_f = (jnp.transpose(w1, (3, 0, 1, 2)).reshape(Cmid, 9 * Cin)
            * s1[:, None]).astype(_MXU_DTYPE)
    w2_f = (jnp.transpose(w2, (3, 0, 1, 2)).reshape(Cout, 9 * Cmid)
            * s2[:, None]).astype(_MXU_DTYPE)
    b1 = params["b1"].reshape(Cmid, 1).astype(jnp.float32)
    b2 = params["b2"].reshape(Cout, 1).astype(jnp.float32)

    # Per-tap horizontal-validity masks (vertical OOB lands in the guard).
    xcol = jnp.arange(HW, dtype=jnp.int32) % W
    def tap_masks(d):
        rows = []
        for _ty in range(3):
            for tx in range(3):
                xc = xcol + (tx - 1) * d
                rows.append(((xc >= 0) & (xc < W)).astype(jnp.float32))
        return jnp.stack(rows, 0)                        # (9, HW)
    m1 = tap_masks(d1)
    m2 = tap_masks(d2)

    kernel = _make_kernel(H, W, Cin, Cmid, Cout, d1, d2, add, bt)

    out = pl.pallas_call(
        kernel,
        out_shape=jax.ShapeDtypeStruct((N, Cout, HW), x_nchw.dtype),
        grid=(N // bt,),
        in_specs=[
            pl.BlockSpec((bt, Cin, L), lambda n: (n, 0, 0)),
            pl.BlockSpec((Cmid, 9 * Cin), lambda n: (0, 0)),
            pl.BlockSpec((Cmid, 1), lambda n: (0, 0)),
            pl.BlockSpec((9, HW), lambda n: (0, 0)),
            pl.BlockSpec((Cout, 9 * Cmid), lambda n: (0, 0)),
            pl.BlockSpec((Cout, 1), lambda n: (0, 0)),
            pl.BlockSpec((9, HW), lambda n: (0, 0)),
        ],
        out_specs=pl.BlockSpec((bt, Cout, HW), lambda n: (n, 0, 0)),
        scratch_shapes=[pltpu.VMEM((Cmid, L), jnp.float32)],   # y1 canvas
        compiler_params=pltpu.CompilerParams(
            dimension_semantics=("parallel",)),
    )(x_pad, w1_f, b1, m1, w2_f, b2, m2)

    # (N, Cout, H*W) is already NCHW layout; this reshape is free.
    return out.reshape(N, Cout, H, W)


# ----------------------------- reference (plain JAX) -------------------------

def _conv_ref(x_nhwc, w_hwio, d):
    return jax.lax.conv_general_dilated(
        x_nhwc, w_hwio, window_strides=(1, 1),
        padding=[(d, d), (d, d)], rhs_dilation=(d, d),
        dimension_numbers=("NHWC", "HWIO", "NHWC"))


def dilated_bottleneck_ref(x_nchw, params):
    x = jnp.transpose(x_nchw, (0, 2, 3, 1))
    y1 = _conv_ref(x, params["w1"], 2) * params["s1"] + params["b1"]
    y2 = _conv_ref(y1, params["w2"], 3) * params["s2"] + params["b2"]
    y = x + y2
    y = y * jax.nn.sigmoid(y)
    return jnp.transpose(y, (0, 3, 1, 2))


# ------------------------------------ main ------------------------------------

if __name__ == "__main__":
    key = jax.random.PRNGKey(0)
    N, C, H, W = 2, 8, 16, 16          # c1 = c2 = 8  -> shortcut active
    e = 0.5
    c_ = int(C * e)                    # hidden channels = 4
    eps = 1e-5

    ks = jax.random.split(key, 11)
    x = jax.random.normal(ks[0], (N, C, H, W), jnp.float32)

    # Conv weights (HWIO layout for the kernel; PyTorch would be OIHW).
    w1 = jax.random.normal(ks[1], (3, 3, C, c_), jnp.float32) * 0.1
    w2 = jax.random.normal(ks[2], (3, 3, c_, C), jnp.float32) * 0.1

    # BatchNorm parameters (deterministic synthetic init), folded to scale/bias.
    g1 = 1.0 + 0.1 * jax.random.normal(ks[3], (c_,), jnp.float32)
    be1 = 0.1 * jax.random.normal(ks[4], (c_,), jnp.float32)
    m1 = 0.1 * jax.random.normal(ks[5], (c_,), jnp.float32)
    v1 = jax.nn.softplus(jax.random.normal(ks[6], (c_,), jnp.float32)) + 0.5
    g2 = 1.0 + 0.1 * jax.random.normal(ks[7], (C,), jnp.float32)
    be2 = 0.1 * jax.random.normal(ks[8], (C,), jnp.float32)
    m2 = 0.1 * jax.random.normal(ks[9], (C,), jnp.float32)
    v2 = jax.nn.softplus(jax.random.normal(ks[10], (C,), jnp.float32)) + 0.5

    s1 = g1 / jnp.sqrt(v1 + eps)
    b1 = be1 - m1 * s1
    s2 = g2 / jnp.sqrt(v2 + eps)
    b2 = be2 - m2 * s2

    params = {"w1": w1, "s1": s1, "b1": b1, "w2": w2, "s2": s2, "b2": b2}

    y = dilated_bottleneck_pallas(x, params)
    y = jax.block_until_ready(y)

    y_ref = dilated_bottleneck_ref(x, params)
    assert y.shape == (N, C, H, W)
    assert jnp.allclose(y, y_ref, atol=1e-3, rtol=1e-3), (
        float(jnp.max(jnp.abs(y - y_ref))))

    print("KERNEL_OK")
</pallas_src>

<mosaic_0001>
module attributes {stable_mosaic.version = 11 : i64} {
  func.func @kernel(%arg0: i32, %arg1: memref<1x8x512xf32, #tpu.memory_space<vmem>>, %arg2: memref<4x72xf32, #tpu.memory_space<vmem>>, %arg3: memref<4x1xf32, #tpu.memory_space<vmem>>, %arg4: memref<9x256xf32, #tpu.memory_space<vmem>>, %arg5: memref<8x36xf32, #tpu.memory_space<vmem>>, %arg6: memref<8x1xf32, #tpu.memory_space<vmem>>, %arg7: memref<9x256xf32, #tpu.memory_space<vmem>>, %arg8: memref<1x8x256xf32, #tpu.memory_space<vmem>>, %arg9: memref<4x512xf32, #tpu.memory_space<vmem>>) attributes {dimension_semantics = [#tpu.dimension_semantics<parallel>], iteration_bounds = array<i64: 2>, scalar_prefetch = 0 : i64, scratch_operands = 1 : i64, tpu.core_type = #tpu.core_type<tc>, window_params = [{transform_indices = @transform_0, window_bounds = array<i64: 1, 8, 512>}, {pipeline_mode = #tpu.pipeline_mode<synchronous>, transform_indices = @transform_1, window_bounds = array<i64: 4, 72>}, {pipeline_mode = #tpu.pipeline_mode<synchronous>, transform_indices = @transform_2, window_bounds = array<i64: 4, 1>}, {pipeline_mode = #tpu.pipeline_mode<synchronous>, transform_indices = @transform_3, window_bounds = array<i64: 9, 256>}, {pipeline_mode = #tpu.pipeline_mode<synchronous>, transform_indices = @transform_4, window_bounds = array<i64: 8, 36>}, {pipeline_mode = #tpu.pipeline_mode<synchronous>, transform_indices = @transform_5, window_bounds = array<i64: 8, 1>}, {pipeline_mode = #tpu.pipeline_mode<synchronous>, transform_indices = @transform_6, window_bounds = array<i64: 9, 256>}, {transform_indices = @transform_7, window_bounds = array<i64: 1, 8, 256>}]} {
    %cst = arith.constant 0.000000e+00 : f32
    %0 = vector.broadcast %cst : f32 to vector<4x128xf32>
    %c0 = arith.constant 0 : index
    %c0_0 = arith.constant 0 : index
    %1 = vector.load %arg9[%c0, %c0_0] : memref<4x512xf32, #tpu.memory_space<vmem>>, vector<4x128xf32>
    tpu.vector_store %arg9[%c0, %c0_0], %0 {strides = array<i32>} : memref<4x512xf32, #tpu.memory_space<vmem>>, vector<4x128xf32>,
    %cst_1 = arith.constant 0.000000e+00 : f32
    %2 = vector.broadcast %cst_1 : f32 to vector<4x128xf32>
    %c0_2 = arith.constant 0 : index
    %c384 = arith.constant 384 : index
    %3 = vector.load %arg9[%c0_2, %c384] : memref<4x512xf32, #tpu.memory_space<vmem>>, vector<4x128xf32>
    tpu.vector_store %arg9[%c0_2, %c384], %2 {strides = array<i32>} : memref<4x512xf32, #tpu.memory_space<vmem>>, vector<4x128xf32>,
    %c0_3 = arith.constant 0 : index
    %c0_4 = arith.constant 0 : index
    %c0_5 = arith.constant 0 : index
    %4 = vector.load %arg1[%c0_3, %c0_4, %c0_5] : memref<1x8x512xf32, #tpu.memory_space<vmem>>, vector<1x8x512xf32>
    %5 = vector.shape_cast %4 : vector<1x8x512xf32> to vector<8x512xf32>
    %6 = vector.extract_strided_slice %5 {offsets = [0, 94], sizes = [8, 256], strides = [1, 1]} : vector<8x512xf32> to vector<8x256xf32>
    %c0_6 = arith.constant 0 : index
    %c0_7 = arith.constant 0 : index
    %7 = vector.load %arg4[%c0_6, %c0_7] : memref<9x256xf32, #tpu.memory_space<vmem>>, vector<1x256xf32>
    %8 = vector.broadcast %7 : vector<1x256xf32> to vector<8x256xf32>
    %9 = arith.mulf %6, %8 : vector<8x256xf32>
    %c0_8 = arith.constant 0 : index
    %c0_9 = arith.constant 0 : index
    %10 = vector.load %arg2[%c0_8, %c0_9] : memref<4x72xf32, #tpu.memory_space<vmem>>, vector<4x8xf32>
    %cst_10 = arith.constant dense<0.000000e+00> : vector<4x256xf32>
    %11 = tpu.matmul %10, %9, %cst_10 {dimension_numbers = #tpu.dot_dimension_numbers<[1], [0], [0], [1], [0, 0, 1, 1], [], []>} : vector<4x8xf32>, vector<8x256xf32>, vector<4x256xf32> -> vector<4x256xf32>
    %12 = vector.extract_strided_slice %5 {offsets = [0, 96], sizes = [8, 256], strides = [1, 1]} : vector<8x512xf32> to vector<8x256xf32>
    %c0_11 = arith.constant 0 : index
    %c8 = arith.constant 8 : index
    %13 = vector.load %arg2[%c0_11, %c8] : memref<4x72xf32, #tpu.memory_space<vmem>>, vector<4x8xf32>
    %cst_12 = arith.constant dense<0.000000e+00> : vector<4x256xf32>
    %14 = tpu.matmul %13, %12, %cst_12 {dimension_numbers = #tpu.dot_dimension_numbers<[1], [0], [0], [1], [0, 0, 1, 1], [], []>} : vector<4x8xf32>, vector<8x256xf32>, vector<4x256xf32> -> vector<4x256xf32>
    %15 = arith.addf %11, %14 : vector<4x256xf32>
    %16 = vector.extract_strided_slice %5 {offsets = [0, 98], sizes = [8, 256], strides = [1, 1]} : vector<8x512xf32> to vector<8x256xf32>
    %c2 = arith.constant 2 : index
    %c0_13 = arith.constant 0 : index
    %17 = vector.load %arg4[%c2, %c0_13] : memref<9x256xf32, #tpu.memory_space<vmem>>, vector<1x256xf32>
    %18 = vector.broadcast %17 : vector<1x256xf32> to vector<8x256xf32>
    %19 = arith.mulf %16, %18 : vector<8x256xf32>
    %c0_14 = arith.constant 0 : index
    %c16 = arith.constant 16 : index
    %20 = vector.load %arg2[%c0_14, %c16] : memref<4x72xf32, #tpu.memory_space<vmem>>, vector<4x8xf32>
    %cst_15 = arith.constant dense<0.000000e+00> : vector<4x256xf32>
    %21 = tpu.matmul %20, %19, %cst_15 {dimension_numbers = #tpu.dot_dimension_numbers<[1], [0], [0], [1], [0, 0, 1, 1], [], []>} : vector<4x8xf32>, vector<8x256xf32>, vector<4x256xf32> -> vector<4x256xf32>
    %22 = arith.addf %15, %21 : vector<4x256xf32>
    %23 = vector.extract_strided_slice %5 {offsets = [0, 126], sizes = [8, 256], strides = [1, 1]} : vector<8x512xf32> to vector<8x256xf32>
    %c3 = arith.constant 3 : index
    %c0_16 = arith.constant 0 : index
    %24 = vector.load %arg4[%c3, %c0_16] : memref<9x256xf32, #tpu.memory_space<vmem>>, vector<1x256xf32>
    %25 = vector.broadcast %24 : vector<1x256xf32> to vector<8x256xf32>
    %26 = arith.mulf %23, %25 : vector<8x256xf32>
    %c0_17 = arith.constant 0 : index
    %c24 = arith.constant 24 : index
    %27 = vector.load %arg2[%c0_17, %c24] : memref<4x72xf32, #tpu.memory_space<vmem>>, vector<4x8xf32>
    %cst_18 = arith.constant dense<0.000000e+00> : vector<4x256xf32>
    %28 = tpu.matmul %27, %26, %cst_18 {dimension_numbers = #tpu.dot_dimension_numbers<[1], [0], [0], [1], [0, 0, 1, 1], [], []>} : vector<4x8xf32>, vector<8x256xf32>, vector<4x256xf32> -> vector<4x256xf32>
    %29 = arith.addf %22, %28 : vector<4x256xf32>
    %30 = vector.extract_strided_slice %5 {offsets = [0, 128], sizes = [8, 256], strides = [1, 1]} : vector<8x512xf32> to vector<8x256xf32>
    %c0_19 = arith.constant 0 : index
    %c32 = arith.constant 32 : index
    %31 = vector.load %arg2[%c0_19, %c32] : memref<4x72xf32, #tpu.memory_space<vmem>>, vector<4x8xf32>
    %cst_20 = arith.constant dense<0.000000e+00> : vector<4x256xf32>
    %32 = tpu.matmul %31, %30, %cst_20 {dimension_numbers = #tpu.dot_dimension_numbers<[1], [0], [0], [1], [0, 0, 1, 1], [], []>} : vector<4x8xf32>, vector<8x256xf32>, vector<4x256xf32> -> vector<4x256xf32>
    %33 = arith.addf %29, %32 : vector<4x256xf32>
    %34 = vector.extract_strided_slice %5 {offsets = [0, 130], sizes = [8, 256], strides = [1, 1]} : vector<8x512xf32> to vector<8x256xf32>
    %c5 = arith.constant 5 : index
    %c0_21 = arith.constant 0 : index
    %35 = vector.load %arg4[%c5, %c0_21] : memref<9x256xf32, #tpu.memory_space<vmem>>, vector<1x256xf32>
    %36 = vector.broadcast %35 : vector<1x256xf32> to vector<8x256xf32>
    %37 = arith.mulf %34, %36 : vector<8x256xf32>
    %c0_22 = arith.constant 0 : index
    %c40 = arith.constant 40 : index
    %38 = vector.load %arg2[%c0_22, %c40] : memref<4x72xf32, #tpu.memory_space<vmem>>, vector<4x8xf32>
    %cst_23 = arith.constant dense<0.000000e+00> : vector<4x256xf32>
    %39 = tpu.matmul %38, %37, %cst_23 {dimension_numbers = #tpu.dot_dimension_numbers<[1], [0], [0], [1], [0, 0, 1, 1], [], []>} : vector<4x8xf32>, vector<8x256xf32>, vector<4x256xf32> -> vector<4x256xf32>
    %40 = arith.addf %33, %39 : vector<4x256xf32>
    %41 = vector.extract_strided_slice %5 {offsets = [0, 158], sizes = [8, 256], strides = [1, 1]} : vector<8x512xf32> to vector<8x256xf32>
    %c6 = arith.constant 6 : index
    %c0_24 = arith.constant 0 : index
    %42 = vector.load %arg4[%c6, %c0_24] : memref<9x256xf32, #tpu.memory_space<vmem>>, vector<1x256xf32>
    %43 = vector.broadcast %42 : vector<1x256xf32> to vector<8x256xf32>
    %44 = arith.mulf %41, %43 : vector<8x256xf32>
    %c0_25 = arith.constant 0 : index
    %c48 = arith.constant 48 : index
    %45 = vector.load %arg2[%c0_25, %c48] : memref<4x72xf32, #tpu.memory_space<vmem>>, vector<4x8xf32>
    %cst_26 = arith.constant dense<0.000000e+00> : vector<4x256xf32>
    %46 = tpu.matmul %45, %44, %cst_26 {dimension_numbers = #tpu.dot_dimension_numbers<[1], [0], [0], [1], [0, 0, 1, 1], [], []>} : vector<4x8xf32>, vector<8x256xf32>, vector<4x256xf32> -> vector<4x256xf32>
    %47 = arith.addf %40, %46 : vector<4x256xf32>
    %48 = vector.extract_strided_slice %5 {offsets = [0, 160], sizes = [8, 256], strides = [1, 1]} : vector<8x512xf32> to vector<8x256xf32>
    %c0_27 = arith.constant 0 : index
    %c56 = arith.constant 56 : index
    %49 = vector.load %arg2[%c0_27, %c56] : memref<4x72xf32, #tpu.memory_space<vmem>>, vector<4x8xf32>
    %cst_28 = arith.constant dense<0.000000e+00> : vector<4x256xf32>
    %50 = tpu.matmul %49, %48, %cst_28 {dimension_numbers = #tpu.dot_dimension_numbers<[1], [0], [0], [1], [0, 0, 1, 1], [], []>} : vector<4x8xf32>, vector<8x256xf32>, vector<4x256xf32> -> vector<4x256xf32>
    %51 = arith.addf %47, %50 : vector<4x256xf32>
    %52 = vector.extract_strided_slice %5 {offsets = [0, 162], sizes = [8, 256], strides = [1, 1]} : vector<8x512xf32> to vector<8x256xf32>
    %c8_29 = arith.constant 8 : index
    %c0_30 = arith.constant 0 : index
    %53 = vector.load %arg4[%c8_29, %c0_30] : memref<9x256xf32, #tpu.memory_space<vmem>>, vector<1x256xf32>
    %54 = vector.broadcast %53 : vector<1x256xf32> to vector<8x256xf32>
    %55 = arith.mulf %52, %54 : vector<8x256xf32>
    %c0_31 = arith.constant 0 : index
    %c64 = arith.constant 64 : index
    %56 = vector.load %arg2[%c0_31, %c64] : memref<4x72xf32, #tpu.memory_space<vmem>>, vector<4x8xf32>
    %cst_32 = arith.constant dense<0.000000e+00> : vector<4x256xf32>
    %57 = tpu.matmul %56, %55, %cst_32 {dimension_numbers = #tpu.dot_dimension_numbers<[1], [0], [0], [1], [0, 0, 1, 1], [], []>} : vector<4x8xf32>, vector<8x256xf32>, vector<4x256xf32> -> vector<4x256xf32>
    %58 = arith.addf %51, %57 : vector<4x256xf32>
    %c0_33 = arith.constant 0 : index
    %c0_34 = arith.constant 0 : index
    %59 = vector.load %arg3[%c0_33, %c0_34] : memref<4x1xf32, #tpu.memory_space<vmem>>, vector<4x1xf32>
    %60 = vector.broadcast %59 : vector<4x1xf32> to vector<4x256xf32>
    %61 = arith.addf %58, %60 : vector<4x256xf32>
    %c0_35 = arith.constant 0 : index
    %c128 = arith.constant 128 : index
    %62 = vector.load %arg9[%c0_35, %c128] : memref<4x512xf32, #tpu.memory_space<vmem>>, vector<4x256xf32>
    tpu.vector_store %arg9[%c0_35, %c128], %61 {strides = array<i32>} : memref<4x512xf32, #tpu.memory_space<vmem>>, vector<4x256xf32>,
    %c0_36 = arith.constant 0 : index
    %c0_37 = arith.constant 0 : index
    %63 = vector.load %arg9[%c0_36, %c0_37] : memref<4x512xf32, #tpu.memory_space<vmem>>, vector<4x512xf32>
    %64 = vector.extract_strided_slice %63 {offsets = [0, 77], sizes = [4, 256], strides = [1, 1]} : vector<4x512xf32> to vector<4x256xf32>
    %c0_38 = arith.constant 0 : index
    %c0_39 = arith.constant 0 : index
    %65 = vector.load %arg7[%c0_38, %c0_39] : memref<9x256xf32, #tpu.memory_space<vmem>>, vector<1x256xf32>
    %66 = vector.broadcast %65 : vector<1x256xf32> to vector<4x256xf32>
    %67 = arith.mulf %64, %66 : vector<4x256xf32>
    %c0_40 = arith.constant 0 : index
    %c0_41 = arith.constant 0 : index
    %68 = vector.load %arg5[%c0_40, %c0_41] : memref<8x36xf32, #tpu.memory_space<vmem>>, vector<8x4xf32>
    %cst_42 = arith.constant dense<0.000000e+00> : vector<8x256xf32>
    %69 = tpu.matmul %68, %67, %cst_42 {dimension_numbers = #tpu.dot_dimension_numbers<[1], [0], [0], [1], [0, 0, 1, 1], [], []>} : vector<8x4xf32>, vector<4x256xf32>, vector<8x256xf32> -> vector<8x256xf32>
    %70 = vector.extract_strided_slice %63 {offsets = [0, 80], sizes = [4, 256], strides = [1, 1]} : vector<4x512xf32> to vector<4x256xf32>
    %c0_43 = arith.constant 0 : index
    %c4 = arith.constant 4 : index
    %71 = vector.load %arg5[%c0_43, %c4] : memref<8x36xf32, #tpu.memory_space<vmem>>, vector<8x4xf32>
    %cst_44 = arith.constant dense<0.000000e+00> : vector<8x256xf32>
    %72 = tpu.matmul %71, %70, %cst_44 {dimension_numbers = #tpu.dot_dimension_numbers<[1], [0], [0], [1], [0, 0, 1, 1], [], []>} : vector<8x4xf32>, vector<4x256xf32>, vector<8x256xf32> -> vector<8x256xf32>
    %73 = arith.addf %69, %72 : vector<8x256xf32>
    %74 = vector.extract_strided_slice %63 {offsets = [0, 83], sizes = [4, 256], strides = [1, 1]} : vector<4x512xf32> to vector<4x256xf32>
    %c2_45 = arith.constant 2 : index
    %c0_46 = arith.constant 0 : index
    %75 = vector.load %arg7[%c2_45, %c0_46] : memref<9x256xf32, #tpu.memory_space<vmem>>, vector<1x256xf32>
    %76 = vector.broadcast %75 : vector<1x256xf32> to vector<4x256xf32>
    %77 = arith.mulf %74, %76 : vector<4x256xf32>
    %c0_47 = arith.constant 0 : index
    %c8_48 = arith.constant 8 : index
    %78 = vector.load %arg5[%c0_47, %c8_48] : memref<8x36xf32, #tpu.memory_space<vmem>>, vector<8x4xf32>
    %cst_49 = arith.constant dense<0.000000e+00> : vector<8x256xf32>
    %79 = tpu.matmul %78, %77, %cst_49 {dimension_numbers = #tpu.dot_dimension_numbers<[1], [0], [0], [1], [0, 0, 1, 1], [], []>} : vector<8x4xf32>, vector<4x256xf32>, vector<8x256xf32> -> vector<8x256xf32>
    %80 = arith.addf %73, %79 : vector<8x256xf32>
    %81 = vector.extract_strided_slice %63 {offsets = [0, 125], sizes = [4, 256], strides = [1, 1]} : vector<4x512xf32> to vector<4x256xf32>
    %c3_50 = arith.constant 3 : index
    %c0_51 = arith.constant 0 : index
    %82 = vector.load %arg7[%c3_50, %c0_51] : memref<9x256xf32, #tpu.memory_space<vmem>>, vector<1x256xf32>
    %83 = vector.broadcast %82 : vector<1x256xf32> to vector<4x256xf32>
    %84 = arith.mulf %81, %83 : vector<4x256xf32>
    %c0_52 = arith.constant 0 : index
    %c12 = arith.constant 12 : index
    %85 = vector.load %arg5[%c0_52, %c12] : memref<8x36xf32, #tpu.memory_space<vmem>>, vector<8x4xf32>
    %cst_53 = arith.constant dense<0.000000e+00> : vector<8x256xf32>
    %86 = tpu.matmul %85, %84, %cst_53 {dimension_numbers = #tpu.dot_dimension_numbers<[1], [0], [0], [1], [0, 0, 1, 1], [], []>} : vector<8x4xf32>, vector<4x256xf32>, vector<8x256xf32> -> vector<8x256xf32>
    %87 = arith.addf %80, %86 : vector<8x256xf32>
    %88 = vector.extract_strided_slice %63 {offsets = [0, 128], sizes = [4, 256], strides = [1, 1]} : vector<4x512xf32> to vector<4x256xf32>
    %c0_54 = arith.constant 0 : index
    %c16_55 = arith.constant 16 : index
    %89 = vector.load %arg5[%c0_54, %c16_55] : memref<8x36xf32, #tpu.memory_space<vmem>>, vector<8x4xf32>
    %cst_56 = arith.constant dense<0.000000e+00> : vector<8x256xf32>
    %90 = tpu.matmul %89, %88, %cst_56 {dimension_numbers = #tpu.dot_dimension_numbers<[1], [0], [0], [1], [0, 0, 1, 1], [], []>} : vector<8x4xf32>, vector<4x256xf32>, vector<8x256xf32> -> vector<8x256xf32>
    %91 = arith.addf %87, %90 : vector<8x256xf32>
    %92 = vector.extract_strided_slice %63 {offsets = [0, 131], sizes = [4, 256], strides = [1, 1]} : vector<4x512xf32> to vector<4x256xf32>
    %c5_57 = arith.constant 5 : index
    %c0_58 = arith.constant 0 : index
    %93 = vector.load %arg7[%c5_57, %c0_58] : memref<9x256xf32, #tpu.memory_space<vmem>>, vector<1x256xf32>
    %94 = vector.broadcast %93 : vector<1x256xf32> to vector<4x256xf32>
    %95 = arith.mulf %92, %94 : vector<4x256xf32>
    %c0_59 = arith.constant 0 : index
    %c20 = arith.constant 20 : index
    %96 = vector.load %arg5[%c0_59, %c20] : memref<8x36xf32, #tpu.memory_space<vmem>>, vector<8x4xf32>
    %cst_60 = arith.constant dense<0.000000e+00> : vector<8x256xf32>
    %97 = tpu.matmul %96, %95, %cst_60 {dimension_numbers = #tpu.dot_dimension_numbers<[1], [0], [0], [1], [0, 0, 1, 1], [], []>} : vector<8x4xf32>, vector<4x256xf32>, vector<8x256xf32> -> vector<8x256xf32>
    %98 = arith.addf %91, %97 : vector<8x256xf32>
    %99 = vector.extract_strided_slice %63 {offsets = [0, 173], sizes = [4, 256], strides = [1, 1]} : vector<4x512xf32> to vector<4x256xf32>
    %c6_61 = arith.constant 6 : index
    %c0_62 = arith.constant 0 : index
    %100 = vector.load %arg7[%c6_61, %c0_62] : memref<9x256xf32, #tpu.memory_space<vmem>>, vector<1x256xf32>
    %101 = vector.broadcast %100 : vector<1x256xf32> to vector<4x256xf32>
    %102 = arith.mulf %99, %101 : vector<4x256xf32>
    %c0_63 = arith.constant 0 : index
    %c24_64 = arith.constant 24 : index
    %103 = vector.load %arg5[%c0_63, %c24_64] : memref<8x36xf32, #tpu.memory_space<vmem>>, vector<8x4xf32>
    %cst_65 = arith.constant dense<0.000000e+00> : vector<8x256xf32>
    %104 = tpu.matmul %103, %102, %cst_65 {dimension_numbers = #tpu.dot_dimension_numbers<[1], [0], [0], [1], [0, 0, 1, 1], [], []>} : vector<8x4xf32>, vector<4x256xf32>, vector<8x256xf32> -> vector<8x256xf32>
    %105 = arith.addf %98, %104 : vector<8x256xf32>
    %106 = vector.extract_strided_slice %63 {offsets = [0, 176], sizes = [4, 256], strides = [1, 1]} : vector<4x512xf32> to vector<4x256xf32>
    %c0_66 = arith.constant 0 : index
    %c28 = arith.constant 28 : index
    %107 = vector.load %arg5[%c0_66, %c28] : memref<8x36xf32, #tpu.memory_space<vmem>>, vector<8x4xf32>
    %cst_67 = arith.constant dense<0.000000e+00> : vector<8x256xf32>
    %108 = tpu.matmul %107, %106, %cst_67 {dimension_numbers = #tpu.dot_dimension_numbers<[1], [0], [0], [1], [0, 0, 1, 1], [], []>} : vector<8x4xf32>, vector<4x256xf32>, vector<8x256xf32> -> vector<8x256xf32>
    %109 = arith.addf %105, %108 : vector<8x256xf32>
    %110 = vector.extract_strided_slice %63 {offsets = [0, 179], sizes = [4, 256], strides = [1, 1]} : vector<4x512xf32> to vector<4x256xf32>
    %c8_68 = arith.constant 8 : index
    %c0_69 = arith.constant 0 : index
    %111 = vector.load %arg7[%c8_68, %c0_69] : memref<9x256xf32, #tpu.memory_space<vmem>>, vector<1x256xf32>
    %112 = vector.broadcast %111 : vector<1x256xf32> to vector<4x256xf32>
    %113 = arith.mulf %110, %112 : vector<4x256xf32>
    %c0_70 = arith.constant 0 : index
    %c32_71 = arith.constant 32 : index
    %114 = vector.load %arg5[%c0_70, %c32_71] : memref<8x36xf32, #tpu.memory_space<vmem>>, vector<8x4xf32>
    %cst_72 = arith.constant dense<0.000000e+00> : vector<8x256xf32>
    %115 = tpu.matmul %114, %113, %cst_72 {dimension_numbers = #tpu.dot_dimension_numbers<[1], [0], [0], [1], [0, 0, 1, 1], [], []>} : vector<8x4xf32>, vector<4x256xf32>, vector<8x256xf32> -> vector<8x256xf32>
    %116 = arith.addf %109, %115 : vector<8x256xf32>
    %c0_73 = arith.constant 0 : index
    %c0_74 = arith.constant 0 : index
    %117 = vector.load %arg6[%c0_73, %c0_74] : memref<8x1xf32, #tpu.memory_space<vmem>>, vector<8x1xf32>
    %118 = vector.broadcast %117 : vector<8x1xf32> to vector<8x256xf32>
    %119 = arith.addf %116, %118 : vector<8x256xf32>
    %120 = vector.extract_strided_slice %5 {offsets = [0, 128], sizes = [8, 256], strides = [1, 1]} : vector<8x512xf32> to vector<8x256xf32>
    %121 = arith.addf %119, %120 : vector<8x256xf32>
    %122 = arith.negf %121 : vector<8x256xf32>
    %123 = math.exp %122 : vector<8x256xf32>
    %cst_75 = arith.constant 1.000000e+00 : f32
    %124 = vector.broadcast %cst_75 : f32 to vector<8x256xf32>
    %125 = arith.addf %124, %123 : vector<8x256xf32>
    %126 = arith.divf %124, %125 : vector<8x256xf32>
    %127 = arith.mulf %121, %126 : vector<8x256xf32>
    %c0_76 = arith.constant 0 : index
    %c0_77 = arith.constant 0 : index
    %c0_78 = arith.constant 0 : index
    %128 = vector.load %arg8[%c0_76, %c0_77, %c0_78] : memref<1x8x256xf32, #tpu.memory_space<vmem>>, vector<1x8x256xf32>
    %129 = vector.shape_cast %128 : vector<1x8x256xf32> to vector<8x256xf32>
    %130 = vector.shape_cast %127 : vector<8x256xf32> to vector<1x8x256xf32>
    tpu.vector_store %arg8[%c0_76, %c0_77, %c0_78], %130 {strides = array<i32>} : memref<1x8x256xf32, #tpu.memory_space<vmem>>, vector<1x8x256xf32>,
    return
  }
  func.func @transform_0(%arg0: i32) -> (i32, i32, i32) {
    %c0_i32 = arith.constant 0 : i32
    %c0_i32_0 = arith.constant 0 : i32
    %c0_i32_1 = arith.constant 0 : i32
    return %arg0, %c0_i32, %c0_i32_0 : i32, i32, i32
  }
  func.func @transform_1(%arg0: i32) -> (i32, i32) {
    %c0_i32 = arith.constant 0 : i32
    %c0_i32_0 = arith.constant 0 : i32
    %c0_i32_1 = arith.constant 0 : i32
    return %c0_i32, %c0_i32_0 : i32, i32
  }
  func.func @transform_2(%arg0: i32) -> (i32, i32) {
    %c0_i32 = arith.constant 0 : i32
    %c0_i32_0 = arith.constant 0 : i32
    %c0_i32_1 = arith.constant 0 : i32
    return %c0_i32, %c0_i32_0 : i32, i32
  }
  func.func @transform_3(%arg0: i32) -> (i32, i32) {
    %c0_i32 = arith.constant 0 : i32
    %c0_i32_0 = arith.constant 0 : i32
    %c0_i32_1 = arith.constant 0 : i32
    return %c0_i32, %c0_i32_0 : i32, i32
  }
  func.func @transform_4(%arg0: i32) -> (i32, i32) {
    %c0_i32 = arith.constant 0 : i32
    %c0_i32_0 = arith.constant 0 : i32
    %c0_i32_1 = arith.constant 0 : i32
    return %c0_i32, %c0_i32_0 : i32, i32
  }
  func.func @transform_5(%arg0: i32) -> (i32, i32) {
    %c0_i32 = arith.constant 0 : i32
    %c0_i32_0 = arith.constant 0 : i32
    %c0_i32_1 = arith.constant 0 : i32
    return %c0_i32, %c0_i32_0 : i32, i32
  }
  func.func @transform_6(%arg0: i32) -> (i32, i32) {
    %c0_i32 = arith.constant 0 : i32
    %c0_i32_0 = arith.constant 0 : i32
    %c0_i32_1 = arith.constant 0 : i32
    return %c0_i32, %c0_i32_0 : i32, i32
  }
  func.func @transform_7(%arg0: i32) -> (i32, i32, i32) {
    %c0_i32 = arith.constant 0 : i32
    %c0_i32_0 = arith.constant 0 : i32
    %c0_i32_1 = arith.constant 0 : i32
    return %arg0, %c0_i32, %c0_i32_0 : i32, i32, i32
  }
}

</mosaic_0001>

<llo_original>
// kernel: tpu_custom_call.1
$region0: #{tpu_custom_call.1}
  #allocation0 [shape = 'u32[]', space=smem, size = 0x4, offset = 0x4, fixed_abs, tag = 'smem constant byte address 0x4 - core index']
  #allocation1 [shape = 'u32[144,128]{1,0:T(1,128)}', space=vmem, size = 0x12000, scoped, tag = 'internal scratch']
  #allocation2 [shape = 'f32[4,512]{1,0:T(4,128)}', space=vmem, size = 0x2000, scoped, tag = 'scratch operand']
  %s0 = inlined_call_operand.hbm [shape: f32[2,8,512], index: 0, kind: input, shape index: {}]
  %s1 = inlined_call_operand.vmem [shape: f32[4,72], index: 1, kind: input, shape index: {}]
  %s2 = inlined_call_operand.vmem [shape: f32[4,1], index: 2, kind: input, shape index: {}]
  %s3 = inlined_call_operand.hbm [shape: f32[9,256], index: 3, kind: input, shape index: {}]
  %s4 = inlined_call_operand.hbm [shape: f32[8,36], index: 4, kind: input, shape index: {}]
  %s5 = inlined_call_operand.vmem [shape: f32[8,1], index: 5, kind: input, shape index: {}]
  %s6 = inlined_call_operand.vmem [shape: f32[9,256], index: 6, kind: input, shape index: {}]
  %s7 = inlined_call_operand.hbm [shape: f32[2,8,256], index: 7, kind: output, shape index: {}]
  %s8 = sld [smem:[#allocation0]]
  $region73: #{tpu_custom_call.1} parent=0
    _
  %s10 = ssub.s32 1, %s8
  %s11 = scalar_select 0, %s10, %s8
  $region1: #{tpu_custom_call.1} parent=0
    #allocation3 [shape = 'u8[32768]{0}', space=vmem, size = 0x8000, scoped, tag = 'input window, operand 0']
    #allocation4 [shape = 's32[2]{0}', space=sflag, size = 0x8, scoped, tag = 'scoped memory for tpu_custom_call.1']
    #allocation5 [shape = 's32[2]{0}', space=sflag, size = 0x8, scoped, tag = 'scoped memory for tpu_custom_call.1']
    #allocation6 [shape = 'u8[16384]{0}', space=vmem, size = 0x4000, scoped, tag = 'input window, operand 3, single buffered']
    #allocation7 [shape = 's32[1]{0}', space=sflag, size = 0x4, scoped, tag = 'scoped memory for tpu_custom_call.1']
    #allocation8 [shape = 'u8[4096]{0}', space=vmem, size = 0x1000, scoped, tag = 'input window, operand 4, single buffered']
    #allocation9 [shape = 'u8[16384]{0}', space=vmem, size = 0x4000, scoped, tag = 'output window, operand 0']
    %12 = vsyncpa [#allocation4], 0
    %s13 = scalar_lea.sflag [#allocation4], 1
    %14 = vsyncpa %s13, 0
    %15 = vsyncpa [#allocation7], 0
    %16 = vsyncpa [#allocation5], 0
    %s17 = scalar_lea.sflag [#allocation5], 1
    %18 = vsyncpa %s17, 0
    loop: start=0, step=1, limit=4
    $region2: #{tpu_custom_call.1} parent=1 // loop_pre_header
      _
    $region3: #{tpu_custom_call.1} parent=1 // loop_header
      %s20 = sphi 0, %s24
      %p21 = scmp.ge.s32.totalorder %s20, 4
      %s30 = sphi 0, %s32
      %s33 = sphi 0, %s30
      %s34 = sphi 0, %s33
      %s50 = sphi 0, %s34
      %s54 = sphi 0, %s54
      %s56 = sphi 0, %s54
      %s57 = sphi 0, %s56
      %s71 = sphi 0, %s57
      %s75 = sphi 0, %s75
      %s77 = sphi 0, %s75
      %s78 = sphi 0, %s77
      %s92 = sphi 0, %s78
      %s96 = sphi 0, %s96
      %s98 = sphi 0, %s96
      %s99 = sphi 0, %s98
      %s113 = sphi 0, %s99
      %s117 = sphi 0, %s117
      %s119 = sphi 0, %s117
      %s120 = sphi 0, %s119
      %s134 = sphi 0, %s120
      %s138 = sphi 0, %s138
      %s140 = sphi 0, %s138
      %s141 = sphi 0, %s140
      %s155 = sphi 0, %s141
      %s159 = sphi 0, %s159
      %s161 = sphi 0, %s159
      %s162 = sphi 0, %s161
      %s176 = sphi 0, %s162
      %s182 = sphi 0, %s184
      %s185 = sphi 0, %s182
      %s186 = sphi 0, %s185
      %s202 = sphi 0, %s186
    $region4: #{tpu_custom_call.1} parent=1 // loop_header_branch
      %23 = sbr.rel (%p21) target = $region8
    $region5: #{tpu_custom_call.1} parent=1 // loop_body
      %s25 = ssub.s32 %s20, 1
      %s26 = ssub.s32 %s20, 2
      %s27 = sadd.s32 %s20, 1
      %s28 = ssub.s32 %s20, %s27
      %p29 = scmp.eq.s32.totalorder %s28, 0
      %s31 = sadd.s32 %s30, 1
      %s32 = scalar_select %p29, %s30, %s31
      %p35 = pneg %p29
      %p36 = scmp.eq.s32.totalorder %s20, 1
      %p37 = por %p35, %p36
      %p38 = scmp.ne.s32.totalorder %s30, %s33
      %p39 = scmp.eq.s32.totalorder %s20, 0
      %p40 = por %p38, %p39
      %p41 = scmp.ne.s32.totalorder %s30, %s33
      %p42 = scmp.eq.s32.totalorder %s25, 1
      %p43 = por %p41, %p42
      %p44 = scmp.ne.s32.totalorder %s33, %s34
      %p45 = scmp.eq.s32.totalorder %s25, 0
      %p46 = por %p44, %p45
      %p47 = scmp.ne.s32.totalorder %s33, %s34
      %p48 = scmp.eq.s32.totalorder %s26, 1
      %p49 = por %p47, %p48
      %p51 = scmp.ne.s32.totalorder %s34, %s50
      %p52 = scmp.eq.s32.totalorder %s26, 0
      %p53 = por %p51, %p52
      %s55 = sadd.s32 %s54, 1
      %p58 = scmp.eq.s32.totalorder %s20, 1
      %p59 = scmp.ne.s32.totalorder %s54, %s56
      %p60 = scmp.eq.s32.totalorder %s20, 0
      %p61 = por %p59, %p60
      %p62 = scmp.ne.s32.totalorder %s54, %s56
      %p63 = scmp.eq.s32.totalorder %s25, 1
      %p64 = por %p62, %p63
      %p65 = scmp.ne.s32.totalorder %s56, %s57
      %p66 = scmp.eq.s32.totalorder %s25, 0
      %p67 = por %p65, %p66
      %p68 = scmp.ne.s32.totalorder %s56, %s57
      %p69 = scmp.eq.s32.totalorder %s26, 1
      %p70 = por %p68, %p69
      %p72 = scmp.ne.s32.totalorder %s57, %s71
      %p73 = scmp.eq.s32.totalorder %s26, 0
      %p74 = por %p72, %p73
      %s76 = sadd.s32 %s75, 1
      %p79 = scmp.eq.s32.totalorder %s20, 1
      %p80 = scmp.ne.s32.totalorder %s75, %s77
      %p81 = scmp.eq.s32.totalorder %s20, 0
      %p82 = por %p80, %p81
      %p83 = scmp.ne.s32.totalorder %s75, %s77
      %p84 = scmp.eq.s32.totalorder %s25, 1
      %p85 = por %p83, %p84
      %p86 = scmp.ne.s32.totalorder %s77, %s78
      %p87 = scmp.eq.s32.totalorder %s25, 0
      %p88 = por %p86, %p87
      %p89 = scmp.ne.s32.totalorder %s77, %s78
      %p90 = scmp.eq.s32.totalorder %s26, 1
      %p91 = por %p89, %p90
      %p93 = scmp.ne.s32.totalorder %s78, %s92
      %p94 = scmp.eq.s32.totalorder %s26, 0
      %p95 = por %p93, %p94
      %s97 = sadd.s32 %s96, 1
      %p100 = scmp.eq.s32.totalorder %s20, 1
      %p101 = scmp.ne.s32.totalorder %s96, %s98
      %p102 = scmp.eq.s32.totalorder %s20, 0
      %p103 = por %p101, %p102
      %p104 = scmp.ne.s32.totalorder %s96, %s98
      %p105 = scmp.eq.s32.totalorder %s25, 1
      %p106 = por %p104, %p105
      %p107 = scmp.ne.s32.totalorder %s98, %s99
      %p108 = scmp.eq.s32.totalorder %s25, 0
      %p109 = por %p107, %p108
      %p110 = scmp.ne.s32.totalorder %s98, %s99
      %p111 = scmp.eq.s32.totalorder %s26, 1
      %p112 = por %p110, %p111
      %p114 = scmp.ne.s32.totalorder %s99, %s113
      %p115 = scmp.eq.s32.totalorder %s26, 0
      %p116 = por %p114, %p115
      %s118 = sadd.s32 %s117, 1
      %p121 = scmp.eq.s32.totalorder %s20, 1
      %p122 = scmp.ne.s32.totalorder %s117, %s119
      %p123 = scmp.eq.s32.totalorder %s20, 0
      %p124 = por %p122, %p123
      %p125 = scmp.ne.s32.totalorder %s117, %s119
      %p126 = scmp.eq.s32.totalorder %s25, 1
      %p127 = por %p125, %p126
      %p128 = scmp.ne.s32.totalorder %s119, %s120
      %p129 = scmp.eq.s32.totalorder %s25, 0
      %p130 = por %p128, %p129
      %p131 = scmp.ne.s32.totalorder %s119, %s120
      %p132 = scmp.eq.s32.totalorder %s26, 1
      %p133 = por %p131, %p132
      %p135 = scmp.ne.s32.totalorder %s120, %s134
      %p136 = scmp.eq.s32.totalorder %s26, 0
      %p137 = por %p135, %p136
      %s139 = sadd.s32 %s138, 1
      %p142 = scmp.eq.s32.totalorder %s20, 1
      %p143 = scmp.ne.s32.totalorder %s138, %s140
      %p144 = scmp.eq.s32.totalorder %s20, 0
      %p145 = por %p143, %p144
      %p146 = scmp.ne.s32.totalorder %s138, %s140
      %p147 = scmp.eq.s32.totalorder %s25, 1
      %p148 = por %p146, %p147
      %p149 = scmp.ne.s32.totalorder %s140, %s141
      %p150 = scmp.eq.s32.totalorder %s25, 0
      %p151 = por %p149, %p150
      %p152 = scmp.ne.s32.totalorder %s140, %s141
      %p153 = scmp.eq.s32.totalorder %s26, 1
      %p154 = por %p152, %p153
      %p156 = scmp.ne.s32.totalorder %s141, %s155
      %p157 = scmp.eq.s32.totalorder %s26, 0
      %p158 = por %p156, %p157
      %s160 = sadd.s32 %s159, 1
      %p163 = scmp.eq.s32.totalorder %s20, 1
      %p164 = scmp.ne.s32.totalorder %s159, %s161
      %p165 = scmp.eq.s32.totalorder %s20, 0
      %p166 = por %p164, %p165
      %p167 = scmp.ne.s32.totalorder %s159, %s161
      %p168 = scmp.eq.s32.totalorder %s25, 1
      %p169 = por %p167, %p168
      %p170 = scmp.ne.s32.totalorder %s161, %s162
      %p171 = scmp.eq.s32.totalorder %s25, 0
      %p172 = por %p170, %p171
      %p173 = scmp.ne.s32.totalorder %s161, %s162
      %p174 = scmp.eq.s32.totalorder %s26, 1
      %p175 = por %p173, %p174
      %p177 = scmp.ne.s32.totalorder %s162, %s176
      %p178 = scmp.eq.s32.totalorder %s26, 0
      %p179 = por %p177, %p178
      %s180 = ssub.s32 %s20, %s27
      %p181 = scmp.eq.s32.totalorder %s180, 0
      %s183 = sadd.s32 %s182, 1
      %s184 = scalar_select %p181, %s182, %s183
      %p187 = pneg %p181
      %p188 = scmp.eq.s32.totalorder %s20, 1
      %p189 = por %p187, %p188
      %p190 = scmp.ne.s32.totalorder %s182, %s185
      %p191 = scmp.eq.s32.totalorder %s20, 0
      %p192 = por %p190, %p191
      %p193 = scmp.ne.s32.totalorder %s182, %s185
      %p194 = scmp.eq.s32.totalorder %s25, 1
      %p195 = por %p193, %p194
      %p196 = scmp.ne.s32.totalorder %s185, %s186
      %p197 = scmp.eq.s32.totalorder %s25, 0
      %p198 = por %p196, %p197
      %p199 = scmp.ne.s32.totalorder %s185, %s186
      %p200 = scmp.eq.s32.totalorder %s26, 1
      %p201 = por %p199, %p200
      %p203 = scmp.ne.s32.totalorder %s186, %s202
      %p204 = scmp.eq.s32.totalorder %s26, 0
      %p205 = por %p203, %p204
      %p206 = scmp.le.s32.totalorder 1, %s20
      %p207 = scmp.lt.s32.totalorder %s20, 3
      %p208 = pnand %p206, %p207
      %p209 = pneg %p208
      // Predicated region
      $region9: #{tpu_custom_call.1} parent=5 // pred_check
        _
      $region10: #{tpu_custom_call.1} parent=5 // pred_check_branch
        %211 = sbr.rel (%p208) target = $region12
      $region11: #{tpu_custom_call.1} parent=5 // pred_region
        %s212 = ssub.s32 %s20, 1
        // Predicated region
        $region13: #{tpu_custom_call.1} parent=11 // pred_check
          %p213 = pneg %p67
        $region14: #{tpu_custom_call.1} parent=11 // pred_check_branch
          %215 = sbr.rel (%p213) target = $region16
        $region15: #{tpu_custom_call.1} parent=11 // pred_region
          _
        $region16: #{tpu_custom_call.1} parent=11 // pred_fallthru
          _
        // Predicated region
        $region17: #{tpu_custom_call.1} parent=11 // pred_check
          %p216 = pneg %p88
        $region18: #{tpu_custom_call.1} parent=11 // pred_check_branch
          %218 = sbr.rel (%p216) target = $region20
        $region19: #{tpu_custom_call.1} parent=11 // pred_region
          _
        $region20: #{tpu_custom_call.1} parent=11 // pred_fallthru
          _
        // Predicated region
        $region21: #{tpu_custom_call.1} parent=11 // pred_check
          %p219 = pneg %p109
        $region22: #{tpu_custom_call.1} parent=11 // pred_check_branch
          %221 = sbr.rel (%p219) target = $region24
        $region23: #{tpu_custom_call.1} parent=11 // pred_region
          %s223 = ssub.s32 512, 512
          %224 = vsyncadd [#allocation7], %s223
          %s225 = sshll.u32 [#allocation6], 4
          %s226 = int_to_ptr.vmem [resolvable:$true] %s225
          %231 = dma.hbm_to_vmem [thread:$0]  %s3, 512, %s226, [#allocation7], 256, 256, 16
        $region24: #{tpu_custom_call.1} parent=11 // pred_fallthru
          _
        // Predicated region
        $region25: #{tpu_custom_call.1} parent=11 // pred_check
          %p232 = pneg %p130
        $region26: #{tpu_custom_call.1} parent=11 // pred_check_branch
          %234 = sbr.rel (%p232) target = $region28
        $region27: #{tpu_custom_call.1} parent=11 // pred_region
          %s236 = ssub.s32 128, 128
          %237 = vsyncadd [#allocation7], %s236
          %s239 = sshll.u32 [#allocation8], 4
          %s240 = int_to_ptr.vmem [resolvable:$true] %s239
          %242 = dma.hbm_to_vmem [thread:$0]  %s4, 128, %s240, [#allocation7]
        $region28: #{tpu_custom_call.1} parent=11 // pred_fallthru
          _
        // Predicated region
        $region29: #{tpu_custom_call.1} parent=11 // pred_check
          %p243 = pneg %p151
        $region30: #{tpu_custom_call.1} parent=11 // pred_check_branch
          %245 = sbr.rel (%p243) target = $region32
        $region31: #{tpu_custom_call.1} parent=11 // pred_region
          _
        $region32: #{tpu_custom_call.1} parent=11 // pred_fallthru
          _
        // Predicated region
        $region33: #{tpu_custom_call.1} parent=11 // pred_check
          %p246 = pneg %p172
        $region34: #{tpu_custom_call.1} parent=11 // pred_check_branch
          %248 = sbr.rel (%p246) target = $region36
        $region35: #{tpu_custom_call.1} parent=11 // pred_region
          _
        $region36: #{tpu_custom_call.1} parent=11 // pred_fallthru
          _
      $region12: #{tpu_custom_call.1} parent=5 // pred_fallthru
        _
      %p249 = scmp.lt.s32.totalorder %s20, 2
      // Predicated region
      $region37: #{tpu_custom_call.1} parent=5 // pred_check
        %p250 = pneg %p249
      $region38: #{tpu_custom_call.1} parent=5 // pred_check_branch
        %252 = sbr.rel (%p250) target = $region40
      $region39: #{tpu_custom_call.1} parent=5 // pred_region
        // Predicated region
        $region41: #{tpu_custom_call.1} parent=39 // pred_check
          %p253 = pneg %p40
        $region42: #{tpu_custom_call.1} parent=39 // pred_check_branch
          %255 = sbr.rel (%p253) target = $region44
        $region43: #{tpu_custom_call.1} parent=39 // pred_region
          %s256 = sand.u32 %s30, 1
          %s257 = scalar_lea.sflag [#allocation4], %s256
          %s258 = sand.u32 %s30, 1
          %s259 = smul.addr %s258, 32
          %s260 = scalar_lea.vmem [#allocation3], %s259
          %s262 = ssub.s32 512, 512
          %263 = vsyncadd %s257, %s262
          %s264 = smul.addr %s20, 4
          %s265 = smul.addr %s264, 128
          %s266 = scalar_lea.hbm %s0, %s265
          %s268 = sshll.u32 %s260, 4
          %s269 = int_to_ptr.vmem [resolvable:$true] %s268
          %271 = dma.hbm_to_vmem [thread:$0]  %s266, 512, %s269, %s257
        $region44: #{tpu_custom_call.1} parent=39 // pred_fallthru
          _
      $region40: #{tpu_custom_call.1} parent=5 // pred_fallthru
        _
      %p272 = scmp.le.s32.totalorder 1, %s20
      %p273 = scmp.lt.s32.totalorder %s20, 3
      %p274 = pnand %p272, %p273
      %p275 = pneg %p274
      // Predicated region
      $region45: #{tpu_custom_call.1} parent=5 // pred_check
        _
      $region46: #{tpu_custom_call.1} parent=5 // pred_check_branch
        %277 = sbr.rel (%p274) target = $region48
      $region47: #{tpu_custom_call.1} parent=5 // pred_region
        %s278 = ssub.s32 %s20, 1
        %s279 = sand.u32 %s33, 1
        %s280 = scalar_lea.sflag [#allocation4], %s279
        %s281 = sand.u32 %s33, 1
        %s282 = smul.addr %s281, 32
        %s283 = scalar_lea.vmem [#allocation3], %s282
        // Predicated region
        $region49: #{tpu_custom_call.1} parent=47 // pred_check
          %p284 = pneg %p46
        $region50: #{tpu_custom_call.1} parent=47 // pred_check_branch
          %286 = sbr.rel (%p284) target = $region52
        $region51: #{tpu_custom_call.1} parent=47 // pred_region
          %287 = dma.done %s280, 512
        $region52: #{tpu_custom_call.1} parent=47 // pred_fallthru
          _
        // Predicated region
        $region53: #{tpu_custom_call.1} parent=47 // pred_check
          %p288 = pneg %p109
        $region54: #{tpu_custom_call.1} parent=47 // pred_check_branch
          %290 = sbr.rel (%p288) target = $region56
        $region55: #{tpu_custom_call.1} parent=47 // pred_region
          %291 = dma.done [#allocation7], 512
        $region56: #{tpu_custom_call.1} parent=47 // pred_fallthru
          _
        // Predicated region
        $region57: #{tpu_custom_call.1} parent=47 // pred_check
          %p292 = pneg %p130
        $region58: #{tpu_custom_call.1} parent=47 // pred_check_branch
          %294 = sbr.rel (%p292) target = $region60
        $region59: #{tpu_custom_call.1} parent=47 // pred_region
          %295 = dma.done [#allocation7], 128
        $region60: #{tpu_custom_call.1} parent=47 // pred_fallthru
          _
        %s296 = sand.u32 %s33, 1
        %s297 = scalar_lea.sflag [#allocation4], %s296
        %s298 = sand.u32 %s33, 1
        %s299 = smul.addr %s298, 32
        %s300 = scalar_lea.vmem [#allocation3], %s299
        %p301 = pneg %p46
        %p302 = pneg %p43
        %p303 = pneg %p67
        %p304 = pneg %p64
        %p305 = pneg %p88
        %p306 = pneg %p85
        %p307 = pneg %p109
        %p308 = pneg %p106
        %p309 = pneg %p130
        %p310 = pneg %p127
        %p311 = pneg %p151
        %p312 = pneg %p148
        %p313 = pneg %p172
        %p314 = pneg %p169
        %p315 = pneg %p198
        %p316 = pneg %p195
        %s317 = sand.u32 %s185, 1
        %s318 = scalar_lea.sflag [#allocation5], %s317
        %s319 = sand.u32 %s185, 1
        %s320 = smul.addr %s319, 16
        %s321 = scalar_lea.vmem [#allocation9], %s320
        %322 = vst [vmem:[#allocation2] sm:$0xf] 0.0
        %323 = vst [vmem:[#allocation2 + $0xc] sm:$0xf] 0.0
        %v324 = vld [vmem:[%s283] sm:$0xff]
        %v325 = vld [vmem:[%s283 + $0x8] sm:$0xff]
        %v326 = vld [vmem:[%s283 + $0x10] sm:$0xff]
        %v327 = vld [vmem:[%s283 + $0x18] sm:$0xff]
        %v328 = vld [vmem:[#allocation6] ss:$8 sm:$0x3]
        %v330 = vlaneseq
        %v331 = vshrl.u32 %v330, 7
        %v332 = vsub.s32 0, %v331
        %v333 = vrot.slane %v328, %v332
        %v334 = vlaneseq
        %v335 = vshrl.u32 %v334, 7
        %v336 = vsub.s32 1, %v335
        %v337 = vrot.slane %v328, %v336
        %338 = vrot.lane.b32.xlu0 %v333, 94
        %v339 = vpop.permute.xlu0 %338
        %340 = vrot.lane.b32.xlu0 %v337, 94
        %v341 = vpop.permute.xlu0 %340
        %vm342 = vcmask 769024
        %v343 = vsel %vm342, %v339, %v341
        %v347 = vmul.f32 %v324, %v339
        %v348 = vmul.f32 %v325, %v343
        %v349 = vmul.f32 %v326, %v341
        %v350 = vld [vmem:[%s1] sm:$0xf]
        %352 = vrot.lane.b32.xlu0 %v350, 120
        %v353 = vpop.permute.xlu0 %352
        %357 = vrot.lane.b32.xlu0 %v324, 32
        %v358 = vpop.permute.xlu0 %357
        %359 = vrot.lane.b32.xlu0 %v325, 32
        %v360 = vpop.permute.xlu0 %359
        %361 = vrot.lane.b32.xlu0 %v326, 32
        %v362 = vpop.permute.xlu0 %361
        %vm363 = vcmask 261120
        %v364 = vsel %vm363, %v358, %v360
        %v365 = vsel %vm363, %v360, %v362
        %vm368 = vcmask 64512
        %v369 = vsel %vm368, %v353, 0
        %371 = vmatprep.subr.mxu0 %v365
        %372 = vmatpush1.msra.mxu0 %v364
        %373 = vmatprep.subr.mxu0 0.0
        %374 = vmatpush1.msra.mxu0 0.0
        %375 = vmatprep.subr.mxu0 0.0
        %376 = vmatpush1.msra.mxu0 0.0
        %377 = vmatprep.subr.mxu0 0.0
        %378 = vmatpush1.msra.mxu0 0.0
        %379 = vmatprep.subr.mxu0 0.0
        %380 = vmatpush1.msra.mxu0 0.0
        %381 = vmatprep.subr.mxu0 0.0
        %382 = vmatpush1.msra.mxu0 0.0
        %383 = vmatprep.subr.mxu0 0.0
        %384 = vmatpush1.msra.mxu0 0.0
        %385 = vmatprep.subr.mxu0 0.0
        %386 = vmatpush1.msra.mxu0 0.0
        %387 = vmatprep.subr.mxu0 0.0
        %388 = vmatpush1.msra.mxu0 0.0
        %389 = vmatprep.subr.mxu0 0.0
        %390 = vmatpush1.msra.mxu0 0.0
        %391 = vmatprep.subr.mxu0 0.0
        %392 = vmatpush1.msra.mxu0 0.0
        %393 = vmatprep.subr.mxu0 0.0
        %394 = vmatpush1.msra.mxu0 0.0
        %395 = vmatprep.subr.mxu0 0.0
        %396 = vmatpush1.msra.mxu0 0.0
        %397 = vmatprep.subr.mxu0 0.0
        %398 = vmatpush1.msra.mxu0 0.0
        %399 = vmatprep.subr.mxu0 0.0
        %400 = vmatpush1.msra.mxu0 0.0
        %401 = vmatprep.subr.mxu0 0.0
        %402 = vmatpush1.msra.mxu0 0.0
        %403 = vmatprep.subr.mxu0 0.0
        %404 = vmatpush1.msra.mxu0 0.0
        %405 = vmatprep.subr.mxu0 0.0
        %406 = vmatpush1.msra.mxu0 0.0
        %407 = vmatprep.subr.mxu0 0.0
        %408 = vmatpush1.msra.mxu0 0.0
        %409 = vmatprep.subr.mxu0 0.0
        %410 = vmatpush1.msra.mxu0 0.0
        %411 = vmatprep.subr.mxu0 0.0
        %412 = vmatpush1.msra.mxu0 0.0
        %413 = vmatprep.subr.mxu0 0.0
        %414 = vmatpush1.msra.mxu0 0.0
        %415 = vmatprep.subr.mxu0 0.0
        %416 = vmatpush1.msra.mxu0 0.0
        %417 = vmatprep.subr.mxu0 0.0
        %418 = vmatpush1.msra.mxu0 0.0
        %419 = vmatprep.subr.mxu0 0.0
        %420 = vmatpush1.msra.mxu0 0.0
        %421 = vmatprep.subr.mxu0 0.0
        %422 = vmatpush1.msra.mxu0 0.0
        %423 = vmatprep.subr.mxu0 0.0
        %424 = vmatpush1.msra.mxu0 0.0
        %425 = vmatprep.subr.mxu0 0.0
        %426 = vmatpush1.msra.mxu0 0.0
        %427 = vmatprep.subr.mxu0 0.0
        %428 = vmatpush1.msra.mxu0 0.0
        %429 = vmatprep.subr.mxu0 0.0
        %430 = vmatpush1.msra.mxu0 0.0
        %431 = vmatprep.subr.mxu0 0.0
        %432 = vmatpush1.msra.mxu0 0.0
        %433 = vmatprep.subr.mxu0 0.0
        %434 = vmatpush1.msra.mxu0 0.0
        %435 = vmatprep.mubr.f32.mxu0 0.0
        %436 = vmatmul.mubr.f32.gmra.mrb[0].mxu0 %v369
        %v437 = vpop.f32.mrb[0].mxu0
        %v438 = vadd.f32 0.0, %v437
        %v439 = vpop.f32.mrb[0].mxu0
        %v440 = vadd.f32 0.0, %v439
        %441 = vdwg.mxu0
        %445 = vrot.lane.b32.xlu0 %v347, 34
        %v446 = vpop.permute.xlu0 %445
        %447 = vrot.lane.b32.xlu0 %v348, 34
        %v448 = vpop.permute.xlu0 %447
        %449 = vrot.lane.b32.xlu0 %v349, 34
        %v450 = vpop.permute.xlu0 %449
        %vm451 = vcmask 277504
        %v452 = vsel %vm451, %v446, %v448
        %v453 = vsel %vm451, %v448, %v450
        %v456 = vsel %vm368, %v350, 0
        %458 = vmatprep.subr.mxu0 %v453
        %459 = vmatpush1.msra.mxu0 %v452
        %460 = vmatprep.subr.mxu0 0.0
        %461 = vmatpush1.msra.mxu0 0.0
        %462 = vmatprep.subr.mxu0 0.0
        %463 = vmatpush1.msra.mxu0 0.0
        %464 = vmatprep.subr.mxu0 0.0
        %465 = vmatpush1.msra.mxu0 0.0
        %466 = vmatprep.subr.mxu0 0.0
        %467 = vmatpush1.msra.mxu0 0.0
        %468 = vmatprep.subr.mxu0 0.0
        %469 = vmatpush1.msra.mxu0 0.0
        %470 = vmatprep.subr.mxu0 0.0
        %471 = vmatpush1.msra.mxu0 0.0
        %472 = vmatprep.subr.mxu0 0.0
        %473 = vmatpush1.msra.mxu0 0.0
        %474 = vmatprep.subr.mxu0 0.0
        %475 = vmatpush1.msra.mxu0 0.0
        %476 = vmatprep.subr.mxu0 0.0
        %477 = vmatpush1.msra.mxu0 0.0
        %478 = vmatprep.subr.mxu0 0.0
        %479 = vmatpush1.msra.mxu0 0.0
        %480 = vmatprep.subr.mxu0 0.0
        %481 = vmatpush1.msra.mxu0 0.0
        %482 = vmatprep.subr.mxu0 0.0
        %483 = vmatpush1.msra.mxu0 0.0
        %484 = vmatprep.subr.mxu0 0.0
        %485 = vmatpush1.msra.mxu0 0.0
        %486 = vmatprep.subr.mxu0 0.0
        %487 = vmatpush1.msra.mxu0 0.0
        %488 = vmatprep.subr.mxu0 0.0
        %489 = vmatpush1.msra.mxu0 0.0
        %490 = vmatprep.subr.mxu0 0.0
        %491 = vmatpush1.msra.mxu0 0.0
        %492 = vmatprep.subr.mxu0 0.0
        %493 = vmatpush1.msra.mxu0 0.0
        %494 = vmatprep.subr.mxu0 0.0
        %495 = vmatpush1.msra.mxu0 0.0
        %496 = vmatprep.subr.mxu0 0.0
        %497 = vmatpush1.msra.mxu0 0.0
        %498 = vmatprep.subr.mxu0 0.0
        %499 = vmatpush1.msra.mxu0 0.0
        %500 = vmatprep.subr.mxu0 0.0
        %501 = vmatpush1.msra.mxu0 0.0
        %502 = vmatprep.subr.mxu0 0.0
        %503 = vmatpush1.msra.mxu0 0.0
        %504 = vmatprep.subr.mxu0 0.0
        %505 = vmatpush1.msra.mxu0 0.0
        %506 = vmatprep.subr.mxu0 0.0
        %507 = vmatpush1.msra.mxu0 0.0
        %508 = vmatprep.subr.mxu0 0.0
        %509 = vmatpush1.msra.mxu0 0.0
        %510 = vmatprep.subr.mxu0 0.0
        %511 = vmatpush1.msra.mxu0 0.0
        %512 = vmatprep.subr.mxu0 0.0
        %513 = vmatpush1.msra.mxu0 0.0
        %514 = vmatprep.subr.mxu0 0.0
        %515 = vmatpush1.msra.mxu0 0.0
        %516 = vmatprep.subr.mxu0 0.0
        %517 = vmatpush1.msra.mxu0 0.0
        %518 = vmatprep.subr.mxu0 0.0
        %519 = vmatpush1.msra.mxu0 0.0
        %520 = vmatprep.subr.mxu0 0.0
        %521 = vmatpush1.msra.mxu0 0.0
        %522 = vmatprep.mubr.f32.mxu0 0.0
        %523 = vmatmul.mubr.f32.gmra.mrb[0].mxu0 %v456
        %v524 = vpop.f32.mrb[0].mxu0
        %v525 = vadd.f32 %v438, %v524
        %v526 = vpop.f32.mrb[0].mxu0
        %v527 = vadd.f32 %v440, %v526
        %528 = vdwg.mxu0
        %s529 = scalar_lea.vmem [#allocation6], 2
        %v530 = vld [vmem:[%s529] ss:$8 sm:$0x3]
        %v532 = vlaneseq
        %v533 = vshrl.u32 %v532, 7
        %v534 = vsub.s32 0, %v533
        %v535 = vrot.slane %v530, %v534
        %v536 = vlaneseq
        %v537 = vshrl.u32 %v536, 7
        %v538 = vsub.s32 1, %v537
        %v539 = vrot.slane %v530, %v538
        %540 = vrot.lane.b32.xlu0 %v535, 98
        %v541 = vpop.permute.xlu0 %540
        %542 = vrot.lane.b32.xlu0 %v539, 98
        %v543 = vpop.permute.xlu0 %542
        %vm544 = vcmask 801792
        %v545 = vsel %vm544, %v541, %v543
        %v549 = vmul.f32 %v324, %v541
        %v550 = vmul.f32 %v325, %v545
        %v551 = vmul.f32 %v326, %v543
        %552 = vrot.lane.b32.xlu0 %v350, 112
        %v553 = vpop.permute.xlu0 %552
        %557 = vrot.lane.b32.xlu0 %v549, 30
        %v558 = vpop.permute.xlu0 %557
        %559 = vrot.lane.b32.xlu0 %v550, 30
        %v560 = vpop.permute.xlu0 %559
        %561 = vrot.lane.b32.xlu0 %v551, 30
        %v562 = vpop.permute.xlu0 %561
        %vm563 = vcmask 244736
        %v564 = vsel %vm563, %v558, %v560
        %v565 = vsel %vm563, %v560, %v562
        %v568 = vsel %vm368, %v553, 0
        %570 = vmatprep.subr.mxu0 %v565
        %571 = vmatpush1.msra.mxu0 %v564
        %572 = vmatprep.subr.mxu0 0.0
        %573 = vmatpush1.msra.mxu0 0.0
        %574 = vmatprep.subr.mxu0 0.0
        %575 = vmatpush1.msra.mxu0 0.0
        %576 = vmatprep.subr.mxu0 0.0
        %577 = vmatpush1.msra.mxu0 0.0
        %578 = vmatprep.subr.mxu0 0.0
        %579 = vmatpush1.msra.mxu0 0.0
        %580 = vmatprep.subr.mxu0 0.0
        %581 = vmatpush1.msra.mxu0 0.0
        %582 = vmatprep.subr.mxu0 0.0
        %583 = vmatpush1.msra.mxu0 0.0
        %584 = vmatprep.subr.mxu0 0.0
        %585 = vmatpush1.msra.mxu0 0.0
        %586 = vmatprep.subr.mxu0 0.0
        %587 = vmatpush1.msra.mxu0 0.0
        %588 = vmatprep.subr.mxu0 0.0
        %589 = vmatpush1.msra.mxu0 0.0
        %590 = vmatprep.subr.mxu0 0.0
        %591 = vmatpush1.msra.mxu0 0.0
        %592 = vmatprep.subr.mxu0 0.0
        %593 = vmatpush1.msra.mxu0 0.0
        %594 = vmatprep.subr.mxu0 0.0
        %595 = vmatpush1.msra.mxu0 0.0
        %596 = vmatprep.subr.mxu0 0.0
        %597 = vmatpush1.msra.mxu0 0.0
        %598 = vmatprep.subr.mxu0 0.0
        %599 = vmatpush1.msra.mxu0 0.0
        %600 = vmatprep.subr.mxu0 0.0
        %601 = vmatpush1.msra.mxu0 0.0
        %602 = vmatprep.subr.mxu0 0.0
        %603 = vmatpush1.msra.mxu0 0.0
        %604 = vmatprep.subr.mxu0 0.0
        %605 = vmatpush1.msra.mxu0 0.0
        %606 = vmatprep.subr.mxu0 0.0
        %607 = vmatpush1.msra.mxu0 0.0
        %608 = vmatprep.subr.mxu0 0.0
        %609 = vmatpush1.msra.mxu0 0.0
        %610 = vmatprep.subr.mxu0 0.0
        %611 = vmatpush1.msra.mxu0 0.0
        %612 = vmatprep.subr.mxu0 0.0
        %613 = vmatpush1.msra.mxu0 0.0
        %614 = vmatprep.subr.mxu0 0.0
        %615 = vmatpush1.msra.mxu0 0.0
        %616 = vmatprep.subr.mxu0 0.0
        %617 = vmatpush1.msra.mxu0 0.0
        %618 = vmatprep.subr.mxu0 0.0
        %619 = vmatpush1.msra.mxu0 0.0
        %620 = vmatprep.subr.mxu0 0.0
        %621 = vmatpush1.msra.mxu0 0.0
        %622 = vmatprep.subr.mxu0 0.0
        %623 = vmatpush1.msra.mxu0 0.0
        %624 = vmatprep.subr.mxu0 0.0
        %625 = vmatpush1.msra.mxu0 0.0
        %626 = vmatprep.subr.mxu0 0.0
        %627 = vmatpush1.msra.mxu0 0.0
        %628 = vmatprep.subr.mxu0 0.0
        %629 = vmatpush1.msra.mxu0 0.0
        %630 = vmatprep.subr.mxu0 0.0
        %631 = vmatpush1.msra.mxu0 0.0
        %632 = vmatprep.subr.mxu0 0.0
        %633 = vmatpush1.msra.mxu0 0.0
        %634 = vmatprep.mubr.f32.mxu0 0.0
        %635 = vmatmul.mubr.f32.gmra.mrb[0].mxu0 %v568
        %v636 = vpop.f32.mrb[0].mxu0
        %v637 = vadd.f32 0.0, %v636
        %v638 = vpop.f32.mrb[0].mxu0
        %v639 = vadd.f32 0.0, %v638
        %640 = vdwg.mxu0
        %v641 = vadd.f32 %v525, %v637
        %v642 = vadd.f32 %v527, %v639
        %s643 = scalar_lea.vmem [#allocation6], 3
        %v644 = vld [vmem:[%s643] ss:$8 sm:$0x3]
        %v646 = vlaneseq
        %v647 = vshrl.u32 %v646, 7
        %v648 = vsub.s32 0, %v647
        %v649 = vrot.slane %v644, %v648
        %v650 = vlaneseq
        %v651 = vshrl.u32 %v650, 7
        %v652 = vsub.s32 1, %v651
        %v653 = vrot.slane %v644, %v652
        %654 = vrot.lane.b32.xlu0 %v649, 126
        %v655 = vpop.permute.xlu0 %654
        %656 = vrot.lane.b32.xlu0 %v653, 126
        %v657 = vpop.permute.xlu0 %656
        %vm658 = vcmask 1031168
        %v659 = vsel %vm658, %v655, %v657
        %v663 = vmul.f32 %v324, %v655
        %v664 = vmul.f32 %v325, %v659
        %v665 = vmul.f32 %v326, %v657
        %666 = vrot.lane.b32.xlu0 %v350, 104
        %v667 = vpop.permute.xlu0 %666
        %671 = vrot.lane.b32.xlu0 %v663, 2
        %v672 = vpop.permute.xlu0 %671
        %673 = vrot.lane.b32.xlu0 %v664, 2
        %v674 = vpop.permute.xlu0 %673
        %675 = vrot.lane.b32.xlu0 %v665, 2
        %v676 = vpop.permute.xlu0 %675
        %vm677 = vcmask 15360
        %v678 = vsel %vm677, %v672, %v674
        %v679 = vsel %vm677, %v674, %v676
        %v682 = vsel %vm368, %v667, 0
        %684 = vmatprep.subr.mxu0 %v679
        %685 = vmatpush1.msra.mxu0 %v678
        %686 = vmatprep.subr.mxu0 0.0
        %687 = vmatpush1.msra.mxu0 0.0
        %688 = vmatprep.subr.mxu0 0.0
        %689 = vmatpush1.msra.mxu0 0.0
        %690 = vmatprep.subr.mxu0 0.0
        %691 = vmatpush1.msra.mxu0 0.0
        %692 = vmatprep.subr.mxu0 0.0
        %693 = vmatpush1.msra.mxu0 0.0
        %694 = vmatprep.subr.mxu0 0.0
        %695 = vmatpush1.msra.mxu0 0.0
        %696 = vmatprep.subr.mxu0 0.0
        %697 = vmatpush1.msra.mxu0 0.0
        %698 = vmatprep.subr.mxu0 0.0
        %699 = vmatpush1.msra.mxu0 0.0
        %700 = vmatprep.subr.mxu0 0.0
        %701 = vmatpush1.msra.mxu0 0.0
        %702 = vmatprep.subr.mxu0 0.0
        %703 = vmatpush1.msra.mxu0 0.0
        %704 = vmatprep.subr.mxu0 0.0
        %705 = vmatpush1.msra.mxu0 0.0
        %706 = vmatprep.subr.mxu0 0.0
        %707 = vmatpush1.msra.mxu0 0.0
        %708 = vmatprep.subr.mxu0 0.0
        %709 = vmatpush1.msra.mxu0 0.0
        %710 = vmatprep.subr.mxu0 0.0
        %711 = vmatpush1.msra.mxu0 0.0
        %712 = vmatprep.subr.mxu0 0.0
        %713 = vmatpush1.msra.mxu0 0.0
        %714 = vmatprep.subr.mxu0 0.0
        %715 = vmatpush1.msra.mxu0 0.0
        %716 = vmatprep.subr.mxu0 0.0
        %717 = vmatpush1.msra.mxu0 0.0
        %718 = vmatprep.subr.mxu0 0.0
        %719 = vmatpush1.msra.mxu0 0.0
        %720 = vmatprep.subr.mxu0 0.0
        %721 = vmatpush1.msra.mxu0 0.0
        %722 = vmatprep.subr.mxu0 0.0
        %723 = vmatpush1.msra.mxu0 0.0
        %724 = vmatprep.subr.mxu0 0.0
        %725 = vmatpush1.msra.mxu0 0.0
        %726 = vmatprep.subr.mxu0 0.0
        %727 = vmatpush1.msra.mxu0 0.0
        %728 = vmatprep.subr.mxu0 0.0
        %729 = vmatpush1.msra.mxu0 0.0
        %730 = vmatprep.subr.mxu0 0.0
        %731 = vmatpush1.msra.mxu0 0.0
        %732 = vmatprep.subr.mxu0 0.0
        %733 = vmatpush1.msra.mxu0 0.0
        %734 = vmatprep.subr.mxu0 0.0
        %735 = vmatpush1.msra.mxu0 0.0
        %736 = vmatprep.subr.mxu0 0.0
        %737 = vmatpush1.msra.mxu0 0.0
        %738 = vmatprep.subr.mxu0 0.0
        %739 = vmatpush1.msra.mxu0 0.0
        %740 = vmatprep.subr.mxu0 0.0
        %741 = vmatpush1.msra.mxu0 0.0
        %742 = vmatprep.subr.mxu0 0.0
        %743 = vmatpush1.msra.mxu0 0.0
        %744 = vmatprep.subr.mxu0 0.0
        %745 = vmatpush1.msra.mxu0 0.0
        %746 = vmatprep.subr.mxu0 0.0
        %747 = vmatpush1.msra.mxu0 0.0
        %748 = vmatprep.mubr.f32.mxu0 0.0
        %749 = vmatmul.mubr.f32.gmra.mrb[0].mxu0 %v682
        %v750 = vpop.f32.mrb[0].mxu0
        %v751 = vadd.f32 0.0, %v750
        %v752 = vpop.f32.mrb[0].mxu0
        %v753 = vadd.f32 0.0, %v752
        %754 = vdwg.mxu0
        %v755 = vadd.f32 %v641, %v751
        %v756 = vadd.f32 %v642, %v753
        %757 = vrot.lane.b32.xlu0 %v350, 96
        %v758 = vpop.permute.xlu0 %757
        %v759 = vsel %vm368, %v758, 0
        %761 = vmatprep.subr.mxu0 %v326
        %762 = vmatpush1.msra.mxu0 %v325
        %763 = vmatprep.subr.mxu0 0.0
        %764 = vmatpush1.msra.mxu0 0.0
        %765 = vmatprep.subr.mxu0 0.0
        %766 = vmatpush1.msra.mxu0 0.0
        %767 = vmatprep.subr.mxu0 0.0
        %768 = vmatpush1.msra.mxu0 0.0
        %769 = vmatprep.subr.mxu0 0.0
        %770 = vmatpush1.msra.mxu0 0.0
        %771 = vmatprep.subr.mxu0 0.0
        %772 = vmatpush1.msra.mxu0 0.0
        %773 = vmatprep.subr.mxu0 0.0
        %774 = vmatpush1.msra.mxu0 0.0
        %775 = vmatprep.subr.mxu0 0.0
        %776 = vmatpush1.msra.mxu0 0.0
        %777 = vmatprep.subr.mxu0 0.0
        %778 = vmatpush1.msra.mxu0 0.0
        %779 = vmatprep.subr.mxu0 0.0
        %780 = vmatpush1.msra.mxu0 0.0
        %781 = vmatprep.subr.mxu0 0.0
        %782 = vmatpush1.msra.mxu0 0.0
        %783 = vmatprep.subr.mxu0 0.0
        %784 = vmatpush1.msra.mxu0 0.0
        %785 = vmatprep.subr.mxu0 0.0
        %786 = vmatpush1.msra.mxu0 0.0
        %787 = vmatprep.subr.mxu0 0.0
        %788 = vmatpush1.msra.mxu0 0.0
        %789 = vmatprep.subr.mxu0 0.0
        %790 = vmatpush1.msra.mxu0 0.0
        %791 = vmatprep.subr.mxu0 0.0
        %792 = vmatpush1.msra.mxu0 0.0
        %793 = vmatprep.subr.mxu0 0.0
        %794 = vmatpush1.msra.mxu0 0.0
        %795 = vmatprep.subr.mxu0 0.0
        %796 = vmatpush1.msra.mxu0 0.0
        %797 = vmatprep.subr.mxu0 0.0
        %798 = vmatpush1.msra.mxu0 0.0
        %799 = vmatprep.subr.mxu0 0.0
        %800 = vmatpush1.msra.mxu0 0.0
        %801 = vmatprep.subr.mxu0 0.0
        %802 = vmatpush1.msra.mxu0 0.0
        %803 = vmatprep.subr.mxu0 0.0
        %804 = vmatpush1.msra.mxu0 0.0
        %805 = vmatprep.subr.mxu0 0.0
        %806 = vmatpush1.msra.mxu0 0.0
        %807 = vmatprep.subr.mxu0 0.0
        %808 = vmatpush1.msra.mxu0 0.0
        %809 = vmatprep.subr.mxu0 0.0
        %810 = vmatpush1.msra.mxu0 0.0
        %811 = vmatprep.subr.mxu0 0.0
        %812 = vmatpush1.msra.mxu0 0.0
        %813 = vmatprep.subr.mxu0 0.0
        %814 = vmatpush1.msra.mxu0 0.0
        %815 = vmatprep.subr.mxu0 0.0
        %816 = vmatpush1.msra.mxu0 0.0
        %817 = vmatprep.subr.mxu0 0.0
        %818 = vmatpush1.msra.mxu0 0.0
        %819 = vmatprep.subr.mxu0 0.0
        %820 = vmatpush1.msra.mxu0 0.0
        %821 = vmatprep.subr.mxu0 0.0
        %822 = vmatpush1.msra.mxu0 0.0
        %823 = vmatprep.subr.mxu0 0.0
        %824 = vmatpush1.msra.mxu0 0.0
        %825 = vmatprep.mubr.f32.mxu0 0.0
        %826 = vmatmul.mubr.f32.gmra.mrb[0].mxu0 %v759
        %v827 = vpop.f32.mrb[0].mxu0
        %v828 = vadd.f32 0.0, %v827
        %v829 = vpop.f32.mrb[0].mxu0
        %v830 = vadd.f32 0.0, %v829
        %831 = vdwg.mxu0
        %v832 = vadd.f32 %v755, %v828
        %v833 = vadd.f32 %v756, %v830
        %s834 = scalar_lea.vmem [#allocation6], 5
        %v835 = vld [vmem:[%s834] ss:$8 sm:$0x3]
        %v837 = vlaneseq
        %v838 = vshrl.u32 %v837, 7
        %v839 = vsub.s32 0, %v838
        %v840 = vrot.slane %v835, %v839
        %v841 = vlaneseq
        %v842 = vshrl.u32 %v841, 7
        %v843 = vsub.s32 1, %v842
        %v844 = vrot.slane %v835, %v843
        %845 = vrot.lane.b32.xlu0 %v840, 2
        %v846 = vpop.permute.xlu0 %845
        %847 = vrot.lane.b32.xlu0 %v844, 2
        %v848 = vpop.permute.xlu0 %847
        %v849 = vsel %vm677, %v846, %v848
        %v853 = vmul.f32 %v325, %v846
        %v854 = vmul.f32 %v326, %v849
        %v855 = vmul.f32 %v327, %v848
        %856 = vrot.lane.b32.xlu0 %v350, 88
        %v857 = vpop.permute.xlu0 %856
        %861 = vrot.lane.b32.xlu0 %v853, 126
        %v862 = vpop.permute.xlu0 %861
        %863 = vrot.lane.b32.xlu0 %v854, 126
        %v864 = vpop.permute.xlu0 %863
        %865 = vrot.lane.b32.xlu0 %v855, 126
        %v866 = vpop.permute.xlu0 %865
        %v867 = vsel %vm658, %v862, %v864
        %v868 = vsel %vm658, %v864, %v866
        %v871 = vsel %vm368, %v857, 0
        %873 = vmatprep.subr.mxu0 %v868
        %874 = vmatpush1.msra.mxu0 %v867
        %875 = vmatprep.subr.mxu0 0.0
        %876 = vmatpush1.msra.mxu0 0.0
        %877 = vmatprep.subr.mxu0 0.0
        %878 = vmatpush1.msra.mxu0 0.0
        %879 = vmatprep.subr.mxu0 0.0
        %880 = vmatpush1.msra.mxu0 0.0
        %881 = vmatprep.subr.mxu0 0.0
        %882 = vmatpush1.msra.mxu0 0.0
        %883 = vmatprep.subr.mxu0 0.0
        %884 = vmatpush1.msra.mxu0 0.0
        %885 = vmatprep.subr.mxu0 0.0
        %886 = vmatpush1.msra.mxu0 0.0
        %887 = vmatprep.subr.mxu0 0.0
        %888 = vmatpush1.msra.mxu0 0.0
        %889 = vmatprep.subr.mxu0 0.0
        %890 = vmatpush1.msra.mxu0 0.0
        %891 = vmatprep.subr.mxu0 0.0
        %892 = vmatpush1.msra.mxu0 0.0
        %893 = vmatprep.subr.mxu0 0.0
        %894 = vmatpush1.msra.mxu0 0.0
        %895 = vmatprep.subr.mxu0 0.0
        %896 = vmatpush1.msra.mxu0 0.0
        %897 = vmatprep.subr.mxu0 0.0
        %898 = vmatpush1.msra.mxu0 0.0
        %899 = vmatprep.subr.mxu0 0.0
        %900 = vmatpush1.msra.mxu0 0.0
        %901 = vmatprep.subr.mxu0 0.0
        %902 = vmatpush1.msra.mxu0 0.0
        %903 = vmatprep.subr.mxu0 0.0
        %904 = vmatpush1.msra.mxu0 0.0
        %905 = vmatprep.subr.mxu0 0.0
        %906 = vmatpush1.msra.mxu0 0.0
        %907 = vmatprep.subr.mxu0 0.0
        %908 = vmatpush1.msra.mxu0 0.0
        %909 = vmatprep.subr.mxu0 0.0
        %910 = vmatpush1.msra.mxu0 0.0
        %911 = vmatprep.subr.mxu0 0.0
        %912 = vmatpush1.msra.mxu0 0.0
        %913 = vmatprep.subr.mxu0 0.0
        %914 = vmatpush1.msra.mxu0 0.0
        %915 = vmatprep.subr.mxu0 0.0
        %916 = vmatpush1.msra.mxu0 0.0
        %917 = vmatprep.subr.mxu0 0.0
        %918 = vmatpush1.msra.mxu0 0.0
        %919 = vmatprep.subr.mxu0 0.0
        %920 = vmatpush1.msra.mxu0 0.0
        %921 = vmatprep.subr.mxu0 0.0
        %922 = vmatpush1.msra.mxu0 0.0
        %923 = vmatprep.subr.mxu0 0.0
        %924 = vmatpush1.msra.mxu0 0.0
        %925 = vmatprep.subr.mxu0 0.0
        %926 = vmatpush1.msra.mxu0 0.0
        %927 = vmatprep.subr.mxu0 0.0
        %928 = vmatpush1.msra.mxu0 0.0
        %929 = vmatprep.subr.mxu0 0.0
        %930 = vmatpush1.msra.mxu0 0.0
        %931 = vmatprep.subr.mxu0 0.0
        %932 = vmatpush1.msra.mxu0 0.0
        %933 = vmatprep.subr.mxu0 0.0
        %934 = vmatpush1.msra.mxu0 0.0
        %935 = vmatprep.subr.mxu0 0.0
        %936 = vmatpush1.msra.mxu0 0.0
        %937 = vmatprep.mubr.f32.mxu0 0.0
        %938 = vmatmul.mubr.f32.gmra.mrb[0].mxu0 %v871
        %v939 = vpop.f32.mrb[0].mxu0
        %v940 = vadd.f32 0.0, %v939
        %v941 = vpop.f32.mrb[0].mxu0
        %v942 = vadd.f32 0.0, %v941
        %943 = vdwg.mxu0
        %v944 = vadd.f32 %v832, %v940
        %v945 = vadd.f32 %v833, %v942
        %s946 = scalar_lea.vmem [#allocation6], 6
        %v947 = vld [vmem:[%s946] ss:$8 sm:$0x3]
        %v949 = vlaneseq
        %v950 = vshrl.u32 %v949, 7
        %v951 = vsub.s32 0, %v950
        %v952 = vrot.slane %v947, %v951
        %v953 = vlaneseq
        %v954 = vshrl.u32 %v953, 7
        %v955 = vsub.s32 1, %v954
        %v956 = vrot.slane %v947, %v955
        %957 = vrot.lane.b32.xlu0 %v952, 30
        %v958 = vpop.permute.xlu0 %957
        %959 = vrot.lane.b32.xlu0 %v956, 30
        %v960 = vpop.permute.xlu0 %959
        %v961 = vsel %vm563, %v958, %v960
        %v965 = vmul.f32 %v325, %v958
        %v966 = vmul.f32 %v326, %v961
        %v967 = vmul.f32 %v327, %v960
        %968 = vrot.lane.b32.xlu0 %v350, 80
        %v969 = vpop.permute.xlu0 %968
        %973 = vrot.lane.b32.xlu0 %v965, 98
        %v974 = vpop.permute.xlu0 %973
        %975 = vrot.lane.b32.xlu0 %v966, 98
        %v976 = vpop.permute.xlu0 %975
        %977 = vrot.lane.b32.xlu0 %v967, 98
        %v978 = vpop.permute.xlu0 %977
        %v979 = vsel %vm544, %v974, %v976
        %v980 = vsel %vm544, %v976, %v978
        %v983 = vsel %vm368, %v969, 0
        %985 = vmatprep.subr.mxu0 %v980
        %986 = vmatpush1.msra.mxu0 %v979
        %987 = vmatprep.subr.mxu0 0.0
        %988 = vmatpush1.msra.mxu0 0.0
        %989 = vmatprep.subr.mxu0 0.0
        %990 = vmatpush1.msra.mxu0 0.0
        %991 = vmatprep.subr.mxu0 0.0
        %992 = vmatpush1.msra.mxu0 0.0
        %993 = vmatprep.subr.mxu0 0.0
        %994 = vmatpush1.msra.mxu0 0.0
        %995 = vmatprep.subr.mxu0 0.0
        %996 = vmatpush1.msra.mxu0 0.0
        %997 = vmatprep.subr.mxu0 0.0
        %998 = vmatpush1.msra.mxu0 0.0
        %999 = vmatprep.subr.mxu0 0.0
        %1000 = vmatpush1.msra.mxu0 0.0
        %1001 = vmatprep.subr.mxu0 0.0
        %1002 = vmatpush1.msra.mxu0 0.0
        %1003 = vmatprep.subr.mxu0 0.0
        %1004 = vmatpush1.msra.mxu0 0.0
        %1005 = vmatprep.subr.mxu0 0.0
        %1006 = vmatpush1.msra.mxu0 0.0
        %1007 = vmatprep.subr.mxu0 0.0
        %1008 = vmatpush1.msra.mxu0 0.0
        %1009 = vmatprep.subr.mxu0 0.0
        %1010 = vmatpush1.msra.mxu0 0.0
        %1011 = vmatprep.subr.mxu0 0.0
        %1012 = vmatpush1.msra.mxu0 0.0
        %1013 = vmatprep.subr.mxu0 0.0
        %1014 = vmatpush1.msra.mxu0 0.0
        %1015 = vmatprep.subr.mxu0 0.0
        %1016 = vmatpush1.msra.mxu0 0.0
        %1017 = vmatprep.subr.mxu0 0.0
        %1018 = vmatpush1.msra.mxu0 0.0
        %1019 = vmatprep.subr.mxu0 0.0
        %1020 = vmatpush1.msra.mxu0 0.0
        %1021 = vmatprep.subr.mxu0 0.0
        %1022 = vmatpush1.msra.mxu0 0.0
        %1023 = vmatprep.subr.mxu0 0.0
        %1024 = vmatpush1.msra.mxu0 0.0
        %1025 = vmatprep.subr.mxu0 0.0
        %1026 = vmatpush1.msra.mxu0 0.0
        %1027 = vmatprep.subr.mxu0 0.0
        %1028 = vmatpush1.msra.mxu0 0.0
        %1029 = vmatprep.subr.mxu0 0.0
        %1030 = vmatpush1.msra.mxu0 0.0
        %1031 = vmatprep.subr.mxu0 0.0
        %1032 = vmatpush1.msra.mxu0 0.0
        %1033 = vmatprep.subr.mxu0 0.0
        %1034 = vmatpush1.msra.mxu0 0.0
        %1035 = vmatprep.subr.mxu0 0.0
        %1036 = vmatpush1.msra.mxu0 0.0
        %1037 = vmatprep.subr.mxu0 0.0
        %1038 = vmatpush1.msra.mxu0 0.0
        %1039 = vmatprep.subr.mxu0 0.0
        %1040 = vmatpush1.msra.mxu0 0.0
        %1041 = vmatprep.subr.mxu0 0.0
        %1042 = vmatpush1.msra.mxu0 0.0
        %1043 = vmatprep.subr.mxu0 0.0
        %1044 = vmatpush1.msra.mxu0 0.0
        %1045 = vmatprep.subr.mxu0 0.0
        %1046 = vmatpush1.msra.mxu0 0.0
        %1047 = vmatprep.subr.mxu0 0.0
        %1048 = vmatpush1.msra.mxu0 0.0
        %1049 = vmatprep.mubr.f32.mxu0 0.0
        %1050 = vmatmul.mubr.f32.gmra.mrb[0].mxu0 %v983
        %v1051 = vpop.f32.mrb[0].mxu0
        %v1052 = vadd.f32 0.0, %v1051
        %v1053 = vpop.f32.mrb[0].mxu0
        %v1054 = vadd.f32 0.0, %v1053
        %1055 = vdwg.mxu0
        %v1056 = vadd.f32 %v944, %v1052
        %v1057 = vadd.f32 %v945, %v1054
        %1058 = vrot.lane.b32.xlu0 %v350, 72
        %v1059 = vpop.permute.xlu0 %1058
        %1061 = vrot.lane.b32.xlu0 %v325, 96
        %v1062 = vpop.permute.xlu0 %1061
        %1063 = vrot.lane.b32.xlu0 %v326, 96
        %v1064 = vpop.permute.xlu0 %1063
        %1065 = vrot.lane.b32.xlu0 %v327, 96
        %v1066 = vpop.permute.xlu0 %1065
        %vm1067 = vcmask 785408
        %v1068 = vsel %vm1067, %v1062, %v1064
        %v1069 = vsel %vm1067, %v1064, %v1066
        %v1072 = vsel %vm368, %v1059, 0
        %1074 = vmatprep.subr.mxu0 %v1069
        %1075 = vmatpush1.msra.mxu0 %v1068
        %1076 = vmatprep.subr.mxu0 0.0
        %1077 = vmatpush1.msra.mxu0 0.0
        %1078 = vmatprep.subr.mxu0 0.0
        %1079 = vmatpush1.msra.mxu0 0.0
        %1080 = vmatprep.subr.mxu0 0.0
        %1081 = vmatpush1.msra.mxu0 0.0
        %1082 = vmatprep.subr.mxu0 0.0
        %1083 = vmatpush1.msra.mxu0 0.0
        %1084 = vmatprep.subr.mxu0 0.0
        %1085 = vmatpush1.msra.mxu0 0.0
        %1086 = vmatprep.subr.mxu0 0.0
        %1087 = vmatpush1.msra.mxu0 0.0
        %1088 = vmatprep.subr.mxu0 0.0
        %1089 = vmatpush1.msra.mxu0 0.0
        %1090 = vmatprep.subr.mxu0 0.0
        %1091 = vmatpush1.msra.mxu0 0.0
        %1092 = vmatprep.subr.mxu0 0.0
        %1093 = vmatpush1.msra.mxu0 0.0
        %1094 = vmatprep.subr.mxu0 0.0
        %1095 = vmatpush1.msra.mxu0 0.0
        %1096 = vmatprep.subr.mxu0 0.0
        %1097 = vmatpush1.msra.mxu0 0.0
        %1098 = vmatprep.subr.mxu0 0.0
        %1099 = vmatpush1.msra.mxu0 0.0
        %1100 = vmatprep.subr.mxu0 0.0
        %1101 = vmatpush1.msra.mxu0 0.0
        %1102 = vmatprep.subr.mxu0 0.0
        %1103 = vmatpush1.msra.mxu0 0.0
        %1104 = vmatprep.subr.mxu0 0.0
        %1105 = vmatpush1.msra.mxu0 0.0
        %1106 = vmatprep.subr.mxu0 0.0
        %1107 = vmatpush1.msra.mxu0 0.0
        %1108 = vmatprep.subr.mxu0 0.0
        %1109 = vmatpush1.msra.mxu0 0.0
        %1110 = vmatprep.subr.mxu0 0.0
        %1111 = vmatpush1.msra.mxu0 0.0
        %1112 = vmatprep.subr.mxu0 0.0
        %1113 = vmatpush1.msra.mxu0 0.0
        %1114 = vmatprep.subr.mxu0 0.0
        %1115 = vmatpush1.msra.mxu0 0.0
        %1116 = vmatprep.subr.mxu0 0.0
        %1117 = vmatpush1.msra.mxu0 0.0
        %1118 = vmatprep.subr.mxu0 0.0
        %1119 = vmatpush1.msra.mxu0 0.0
        %1120 = vmatprep.subr.mxu0 0.0
        %1121 = vmatpush1.msra.mxu0 0.0
        %1122 = vmatprep.subr.mxu0 0.0
        %1123 = vmatpush1.msra.mxu0 0.0
        %1124 = vmatprep.subr.mxu0 0.0
        %1125 = vmatpush1.msra.mxu0 0.0
        %1126 = vmatprep.subr.mxu0 0.0
        %1127 = vmatpush1.msra.mxu0 0.0
        %1128 = vmatprep.subr.mxu0 0.0
        %1129 = vmatpush1.msra.mxu0 0.0
        %1130 = vmatprep.subr.mxu0 0.0
        %1131 = vmatpush1.msra.mxu0 0.0
        %1132 = vmatprep.subr.mxu0 0.0
        %1133 = vmatpush1.msra.mxu0 0.0
        %1134 = vmatprep.subr.mxu0 0.0
        %1135 = vmatpush1.msra.mxu0 0.0
        %1136 = vmatprep.subr.mxu0 0.0
        %1137 = vmatpush1.msra.mxu0 0.0
        %1138 = vmatprep.mubr.f32.mxu0 0.0
        %1139 = vmatmul.mubr.f32.gmra.mrb[0].mxu0 %v1072
        %v1140 = vpop.f32.mrb[0].mxu0
        %v1141 = vadd.f32 0.0, %v1140
        %v1142 = vpop.f32.mrb[0].mxu0
        %v1143 = vadd.f32 0.0, %v1142
        %1144 = vdwg.mxu0
        %v1145 = vadd.f32 %v1056, %v1141
        %v1146 = vadd.f32 %v1057, %v1143
        %s1147 = scalar_lea.vmem [#allocation6], 16
        %v1148 = vld [vmem:[%s1147] ss:$8 sm:$0x3]
        %v1150 = vlaneseq
        %v1151 = vshrl.u32 %v1150, 7
        %v1152 = vsub.s32 0, %v1151
        %v1153 = vrot.slane %v1148, %v1152
        %v1154 = vlaneseq
        %v1155 = vshrl.u32 %v1154, 7
        %v1156 = vsub.s32 1, %v1155
        %v1157 = vrot.slane %v1148, %v1156
        %1158 = vrot.lane.b32.xlu0 %v1153, 34
        %v1159 = vpop.permute.xlu0 %1158
        %1160 = vrot.lane.b32.xlu0 %v1157, 34
        %v1161 = vpop.permute.xlu0 %1160
        %v1162 = vsel %vm451, %v1159, %v1161
        %v1166 = vmul.f32 %v325, %v1159
        %v1167 = vmul.f32 %v326, %v1162
        %v1168 = vmul.f32 %v327, %v1161
        %1169 = vrot.lane.b32.xlu0 %v350, 64
        %v1170 = vpop.permute.xlu0 %1169
        %1174 = vrot.lane.b32.xlu0 %v1166, 94
        %v1175 = vpop.permute.xlu0 %1174
        %1176 = vrot.lane.b32.xlu0 %v1167, 94
        %v1177 = vpop.permute.xlu0 %1176
        %1178 = vrot.lane.b32.xlu0 %v1168, 94
        %v1179 = vpop.permute.xlu0 %1178
        %v1180 = vsel %vm342, %v1175, %v1177
        %v1181 = vsel %vm342, %v1177, %v1179
        %v1184 = vsel %vm368, %v1170, 0
        %1186 = vmatprep.subr.mxu0 %v1181
        %1187 = vmatpush1.msra.mxu0 %v1180
        %1188 = vmatprep.subr.mxu0 0.0
        %1189 = vmatpush1.msra.mxu0 0.0
        %1190 = vmatprep.subr.mxu0 0.0
        %1191 = vmatpush1.msra.mxu0 0.0
        %1192 = vmatprep.subr.mxu0 0.0
        %1193 = vmatpush1.msra.mxu0 0.0
        %1194 = vmatprep.subr.mxu0 0.0
        %1195 = vmatpush1.msra.mxu0 0.0
        %1196 = vmatprep.subr.mxu0 0.0
        %1197 = vmatpush1.msra.mxu0 0.0
        %1198 = vmatprep.subr.mxu0 0.0
        %1199 = vmatpush1.msra.mxu0 0.0
        %1200 = vmatprep.subr.mxu0 0.0
        %1201 = vmatpush1.msra.mxu0 0.0
        %1202 = vmatprep.subr.mxu0 0.0
        %1203 = vmatpush1.msra.mxu0 0.0
        %1204 = vmatprep.subr.mxu0 0.0
        %1205 = vmatpush1.msra.mxu0 0.0
        %1206 = vmatprep.subr.mxu0 0.0
        %1207 = vmatpush1.msra.mxu0 0.0
        %1208 = vmatprep.subr.mxu0 0.0
        %1209 = vmatpush1.msra.mxu0 0.0
        %1210 = vmatprep.subr.mxu0 0.0
        %1211 = vmatpush1.msra.mxu0 0.0
        %1212 = vmatprep.subr.mxu0 0.0
        %1213 = vmatpush1.msra.mxu0 0.0
        %1214 = vmatprep.subr.mxu0 0.0
        %1215 = vmatpush1.msra.mxu0 0.0
        %1216 = vmatprep.subr.mxu0 0.0
        %1217 = vmatpush1.msra.mxu0 0.0
        %1218 = vmatprep.subr.mxu0 0.0
        %1219 = vmatpush1.msra.mxu0 0.0
        %1220 = vmatprep.subr.mxu0 0.0
        %1221 = vmatpush1.msra.mxu0 0.0
        %1222 = vmatprep.subr.mxu0 0.0
        %1223 = vmatpush1.msra.mxu0 0.0
        %1224 = vmatprep.subr.mxu0 0.0
        %1225 = vmatpush1.msra.mxu0 0.0
        %1226 = vmatprep.subr.mxu0 0.0
        %1227 = vmatpush1.msra.mxu0 0.0
        %1228 = vmatprep.subr.mxu0 0.0
        %1229 = vmatpush1.msra.mxu0 0.0
        %1230 = vmatprep.subr.mxu0 0.0
        %1231 = vmatpush1.msra.mxu0 0.0
        %1232 = vmatprep.subr.mxu0 0.0
        %1233 = vmatpush1.msra.mxu0 0.0
        %1234 = vmatprep.subr.mxu0 0.0
        %1235 = vmatpush1.msra.mxu0 0.0
        %1236 = vmatprep.subr.mxu0 0.0
        %1237 = vmatpush1.msra.mxu0 0.0
        %1238 = vmatprep.subr.mxu0 0.0
        %1239 = vmatpush1.msra.mxu0 0.0
        %1240 = vmatprep.subr.mxu0 0.0
        %1241 = vmatpush1.msra.mxu0 0.0
        %1242 = vmatprep.subr.mxu0 0.0
        %1243 = vmatpush1.msra.mxu0 0.0
        %1244 = vmatprep.subr.mxu0 0.0
        %1245 = vmatpush1.msra.mxu0 0.0
        %1246 = vmatprep.subr.mxu0 0.0
        %1247 = vmatpush1.msra.mxu0 0.0
        %1248 = vmatprep.subr.mxu0 0.0
        %1249 = vmatpush1.msra.mxu0 0.0
        %1250 = vmatprep.mubr.f32.mxu0 0.0
        %1251 = vmatmul.mubr.f32.gmra.mrb[0].mxu0 %v1184
        %v1252 = vpop.f32.mrb[0].mxu0
        %v1253 = vadd.f32 0.0, %v1252
        %v1254 = vpop.f32.mrb[0].mxu0
        %v1255 = vadd.f32 0.0, %v1254
        %1256 = vdwg.mxu0
        %v1257 = vadd.f32 %v1145, %v1253
        %v1258 = vadd.f32 %v1146, %v1255
        %v1259 = vld [vmem:[%s2] sm:$0xf]
        %1261 = vset.pattern.permute.xlu0 0
        %1262 = vperm.xlu0 %1261, %v1259
        %v1263 = vpop.permute.xlu0 %1262
        %v1265 = vadd.f32 %v1257, %v1263
        %v1266 = vadd.f32 %v1258, %v1263
        %v1269 = vcombine.low %v1265, %v1266
        %1271 = vst [vmem:[#allocation2 + $0x4] sm:$0xff] %v1269
        %v1272 = vld [vmem:[#allocation2] sm:$0xff]
        %v1273 = vld [vmem:[#allocation2 + $0x8] sm:$0xff]
        %v1274 = vld [vmem:[%s6] ss:$8 sm:$0x3]
        %v1276 = vlaneseq
        %v1277 = vshrl.u32 %v1276, 7
        %v1278 = vsub.s32 0, %v1277
        %v1279 = vrot.slane %v1274, %v1278
        %v1280 = vlaneseq
        %v1281 = vshrl.u32 %v1280, 7
        %v1282 = vsub.s32 1, %v1281
        %v1283 = vrot.slane %v1274, %v1282
        %v1284 = vcombine.low %v1279, %v1283
        %1285 = vrot.lane.b32.xlu0 %v1284, 77
        %v1286 = vpop.permute.xlu0 %1285
        %v1287 = vrot.slane %v1286, 4
        %vm1288 = vcmask 629760
        %v1289 = vsel %vm1288, %v1287, %v1286
        %v1292 = vmul.f32 %v1272, %v1289
        %v1293 = vmul.f32 %v1273, %v1287
        %v1294 = vld [vmem:[#allocation8] sm:$0xff]
        %1296 = vrot.lane.b32.xlu0 %v1294, 124
        %v1297 = vpop.permute.xlu0 %1296
        %v1300 = vcombine.high %v1272, %v1272
        %1301 = vrot.lane.b32.xlu0 %v1272, 48
        %v1302 = vpop.permute.xlu0 %1301
        %1303 = vrot.lane.b32.xlu0 %v1300, 48
        %v1304 = vpop.permute.xlu0 %1303
        %1305 = vrot.lane.b32.xlu0 %v1273, 48
        %v1306 = vpop.permute.xlu0 %1305
        %vm1307 = vcmask 392192
        %v1308 = vsel %vm1307, %v1302, %v1304
        %v1309 = vsel %vm1307, %v1304, %v1306
        %vm1310 = vcmask 31744
        %v1311 = vsel %vm1310, %v1297, 0
        %vm1313 = vcmask 1043456
        %v1314 = vsel %vm1313, %v1308, 0
        %v1316 = vsel %vm1313, %v1309, 0
        %1318 = vmatprep.subr.mxu0 %v1316
        %1319 = vmatpush1.msra.mxu0 %v1314
        %1320 = vmatprep.subr.mxu0 0.0
        %1321 = vmatpush1.msra.mxu0 0.0
        %1322 = vmatprep.subr.mxu0 0.0
        %1323 = vmatpush1.msra.mxu0 0.0
        %1324 = vmatprep.subr.mxu0 0.0
        %1325 = vmatpush1.msra.mxu0 0.0
        %1326 = vmatprep.subr.mxu0 0.0
        %1327 = vmatpush1.msra.mxu0 0.0
        %1328 = vmatprep.subr.mxu0 0.0
        %1329 = vmatpush1.msra.mxu0 0.0
        %1330 = vmatprep.subr.mxu0 0.0
        %1331 = vmatpush1.msra.mxu0 0.0
        %1332 = vmatprep.subr.mxu0 0.0
        %1333 = vmatpush1.msra.mxu0 0.0
        %1334 = vmatprep.subr.mxu0 0.0
        %1335 = vmatpush1.msra.mxu0 0.0
        %1336 = vmatprep.subr.mxu0 0.0
        %1337 = vmatpush1.msra.mxu0 0.0
        %1338 = vmatprep.subr.mxu0 0.0
        %1339 = vmatpush1.msra.mxu0 0.0
        %1340 = vmatprep.subr.mxu0 0.0
        %1341 = vmatpush1.msra.mxu0 0.0
        %1342 = vmatprep.subr.mxu0 0.0
        %1343 = vmatpush1.msra.mxu0 0.0
        %1344 = vmatprep.subr.mxu0 0.0
        %1345 = vmatpush1.msra.mxu0 0.0
        %1346 = vmatprep.subr.mxu0 0.0
        %1347 = vmatpush1.msra.mxu0 0.0
        %1348 = vmatprep.subr.mxu0 0.0
        %1349 = vmatpush1.msra.mxu0 0.0
        %1350 = vmatprep.subr.mxu0 0.0
        %1351 = vmatpush1.msra.mxu0 0.0
        %1352 = vmatprep.subr.mxu0 0.0
        %1353 = vmatpush1.msra.mxu0 0.0
        %1354 = vmatprep.subr.mxu0 0.0
        %1355 = vmatpush1.msra.mxu0 0.0
        %1356 = vmatprep.subr.mxu0 0.0
        %1357 = vmatpush1.msra.mxu0 0.0
        %1358 = vmatprep.subr.mxu0 0.0
        %1359 = vmatpush1.msra.mxu0 0.0
        %1360 = vmatprep.subr.mxu0 0.0
        %1361 = vmatpush1.msra.mxu0 0.0
        %1362 = vmatprep.subr.mxu0 0.0
        %1363 = vmatpush1.msra.mxu0 0.0
        %1364 = vmatprep.subr.mxu0 0.0
        %1365 = vmatpush1.msra.mxu0 0.0
        %1366 = vmatprep.subr.mxu0 0.0
        %1367 = vmatpush1.msra.mxu0 0.0
        %1368 = vmatprep.subr.mxu0 0.0
        %1369 = vmatpush1.msra.mxu0 0.0
        %1370 = vmatprep.subr.mxu0 0.0
        %1371 = vmatpush1.msra.mxu0 0.0
        %1372 = vmatprep.subr.mxu0 0.0
        %1373 = vmatpush1.msra.mxu0 0.0
        %1374 = vmatprep.subr.mxu0 0.0
        %1375 = vmatpush1.msra.mxu0 0.0
        %1376 = vmatprep.subr.mxu0 0.0
        %1377 = vmatpush1.msra.mxu0 0.0
        %1378 = vmatprep.subr.mxu0 0.0
        %1379 = vmatpush1.msra.mxu0 0.0
        %1380 = vmatprep.subr.mxu0 0.0
        %1381 = vmatpush1.msra.mxu0 0.0
        %1382 = vmatprep.mubr.f32.mxu0 0.0
        %1383 = vmatmul.mubr.f32.gmra.mrb[0].mxu0 %v1311
        %v1384 = vpop.f32.mrb[0].mxu0
        %v1385 = vadd.f32 0.0, %v1384
        %v1386 = vpop.f32.mrb[0].mxu0
        %v1387 = vadd.f32 0.0, %v1386
        %1388 = vdwg.mxu0
        %v1391 = vcombine.high %v1292, %v1292
        %1392 = vrot.lane.b32.xlu0 %v1292, 51
        %v1393 = vpop.permute.xlu0 %1392
        %1394 = vrot.lane.b32.xlu0 %v1391, 51
        %v1395 = vpop.permute.xlu0 %1394
        %1396 = vrot.lane.b32.xlu0 %v1293, 51
        %v1397 = vpop.permute.xlu0 %1396
        %vm1398 = vcmask 416768
        %v1399 = vsel %vm1398, %v1393, %v1395
        %v1400 = vsel %vm1398, %v1395, %v1397
        %v1401 = vsel %vm1310, %v1294, 0
        %v1403 = vsel %vm1313, %v1399, 0
        %v1405 = vsel %vm1313, %v1400, 0
        %1407 = vmatprep.subr.mxu0 %v1405
        %1408 = vmatpush1.msra.mxu0 %v1403
        %1409 = vmatprep.subr.mxu0 0.0
        %1410 = vmatpush1.msra.mxu0 0.0
        %1411 = vmatprep.subr.mxu0 0.0
        %1412 = vmatpush1.msra.mxu0 0.0
        %1413 = vmatprep.subr.mxu0 0.0
        %1414 = vmatpush1.msra.mxu0 0.0
        %1415 = vmatprep.subr.mxu0 0.0
        %1416 = vmatpush1.msra.mxu0 0.0
        %1417 = vmatprep.subr.mxu0 0.0
        %1418 = vmatpush1.msra.mxu0 0.0
        %1419 = vmatprep.subr.mxu0 0.0
        %1420 = vmatpush1.msra.mxu0 0.0
        %1421 = vmatprep.subr.mxu0 0.0
        %1422 = vmatpush1.msra.mxu0 0.0
        %1423 = vmatprep.subr.mxu0 0.0
        %1424 = vmatpush1.msra.mxu0 0.0
        %1425 = vmatprep.subr.mxu0 0.0
        %1426 = vmatpush1.msra.mxu0 0.0
        %1427 = vmatprep.subr.mxu0 0.0
        %1428 = vmatpush1.msra.mxu0 0.0
        %1429 = vmatprep.subr.mxu0 0.0
        %1430 = vmatpush1.msra.mxu0 0.0
        %1431 = vmatprep.subr.mxu0 0.0
        %1432 = vmatpush1.msra.mxu0 0.0
        %1433 = vmatprep.subr.mxu0 0.0
        %1434 = vmatpush1.msra.mxu0 0.0
        %1435 = vmatprep.subr.mxu0 0.0
        %1436 = vmatpush1.msra.mxu0 0.0
        %1437 = vmatprep.subr.mxu0 0.0
        %1438 = vmatpush1.msra.mxu0 0.0
        %1439 = vmatprep.subr.mxu0 0.0
        %1440 = vmatpush1.msra.mxu0 0.0
        %1441 = vmatprep.subr.mxu0 0.0
        %1442 = vmatpush1.msra.mxu0 0.0
        %1443 = vmatprep.subr.mxu0 0.0
        %1444 = vmatpush1.msra.mxu0 0.0
        %1445 = vmatprep.subr.mxu0 0.0
        %1446 = vmatpush1.msra.mxu0 0.0
        %1447 = vmatprep.subr.mxu0 0.0
        %1448 = vmatpush1.msra.mxu0 0.0
        %1449 = vmatprep.subr.mxu0 0.0
        %1450 = vmatpush1.msra.mxu0 0.0
        %1451 = vmatprep.subr.mxu0 0.0
        %1452 = vmatpush1.msra.mxu0 0.0
        %1453 = vmatprep.subr.mxu0 0.0
        %1454 = vmatpush1.msra.mxu0 0.0
        %1455 = vmatprep.subr.mxu0 0.0
        %1456 = vmatpush1.msra.mxu0 0.0
        %1457 = vmatprep.subr.mxu0 0.0
        %1458 = vmatpush1.msra.mxu0 0.0
        %1459 = vmatprep.subr.mxu0 0.0
        %1460 = vmatpush1.msra.mxu0 0.0
        %1461 = vmatprep.subr.mxu0 0.0
        %1462 = vmatpush1.msra.mxu0 0.0
        %1463 = vmatprep.subr.mxu0 0.0
        %1464 = vmatpush1.msra.mxu0 0.0
        %1465 = vmatprep.subr.mxu0 0.0
        %1466 = vmatpush1.msra.mxu0 0.0
        %1467 = vmatprep.subr.mxu0 0.0
        %1468 = vmatpush1.msra.mxu0 0.0
        %1469 = vmatprep.subr.mxu0 0.0
        %1470 = vmatpush1.msra.mxu0 0.0
        %1471 = vmatprep.mubr.f32.mxu0 0.0
        %1472 = vmatmul.mubr.f32.gmra.mrb[0].mxu0 %v1401
        %v1473 = vpop.f32.mrb[0].mxu0
        %v1474 = vadd.f32 %v1385, %v1473
        %v1475 = vpop.f32.mrb[0].mxu0
        %v1476 = vadd.f32 %v1387, %v1475
        %1477 = vdwg.mxu0
        %s1478 = scalar_lea.vmem %s6, 2
        %v1479 = vld [vmem:[%s1478] ss:$8 sm:$0x3]
        %v1481 = vlaneseq
        %v1482 = vshrl.u32 %v1481, 7
        %v1483 = vsub.s32 0, %v1482
        %v1484 = vrot.slane %v1479, %v1483
        %v1485 = vlaneseq
        %v1486 = vshrl.u32 %v1485, 7
        %v1487 = vsub.s32 1, %v1486
        %v1488 = vrot.slane %v1479, %v1487
        %v1489 = vcombine.low %v1484, %v1488
        %1490 = vrot.lane.b32.xlu0 %v1489, 83
        %v1491 = vpop.permute.xlu0 %1490
        %v1492 = vrot.slane %v1491, 4
        %vm1493 = vcmask 678912
        %v1494 = vsel %vm1493, %v1492, %v1491
        %v1497 = vmul.f32 %v1272, %v1494
        %v1498 = vmul.f32 %v1273, %v1492
        %v1499 = vld [vmem:[#allocation8] sm:$0xff]
        %1501 = vrot.lane.b32.xlu0 %v1499, 120
        %v1502 = vpop.permute.xlu0 %1501
        %v1505 = vcombine.high %v1497, %v1497
        %1506 = vrot.lane.b32.xlu0 %v1497, 45
        %v1507 = vpop.permute.xlu0 %1506
        %1508 = vrot.lane.b32.xlu0 %v1505, 45
        %v1509 = vpop.permute.xlu0 %1508
        %1510 = vrot.lane.b32.xlu0 %v1498, 45
        %v1511 = vpop.permute.xlu0 %1510
        %vm1512 = vcmask 367616
        %v1513 = vsel %vm1512, %v1507, %v1509
        %v1514 = vsel %vm1512, %v1509, %v1511
        %v1515 = vsel %vm1310, %v1502, 0
        %v1517 = vsel %vm1313, %v1513, 0
        %v1519 = vsel %vm1313, %v1514, 0
        %1521 = vmatprep.subr.mxu0 %v1519
        %1522 = vmatpush1.msra.mxu0 %v1517
        %1523 = vmatprep.subr.mxu0 0.0
        %1524 = vmatpush1.msra.mxu0 0.0
        %1525 = vmatprep.subr.mxu0 0.0
        %1526 = vmatpush1.msra.mxu0 0.0
        %1527 = vmatprep.subr.mxu0 0.0
        %1528 = vmatpush1.msra.mxu0 0.0
        %1529 = vmatprep.subr.mxu0 0.0
        %1530 = vmatpush1.msra.mxu0 0.0
        %1531 = vmatprep.subr.mxu0 0.0
        %1532 = vmatpush1.msra.mxu0 0.0
        %1533 = vmatprep.subr.mxu0 0.0
        %1534 = vmatpush1.msra.mxu0 0.0
        %1535 = vmatprep.subr.mxu0 0.0
        %1536 = vmatpush1.msra.mxu0 0.0
        %1537 = vmatprep.subr.mxu0 0.0
        %1538 = vmatpush1.msra.mxu0 0.0
        %1539 = vmatprep.subr.mxu0 0.0
        %1540 = vmatpush1.msra.mxu0 0.0
        %1541 = vmatprep.subr.mxu0 0.0
        %1542 = vmatpush1.msra.mxu0 0.0
        %1543 = vmatprep.subr.mxu0 0.0
        %1544 = vmatpush1.msra.mxu0 0.0
        %1545 = vmatprep.subr.mxu0 0.0
        %1546 = vmatpush1.msra.mxu0 0.0
        %1547 = vmatprep.subr.mxu0 0.0
        %1548 = vmatpush1.msra.mxu0 0.0
        %1549 = vmatprep.subr.mxu0 0.0
        %1550 = vmatpush1.msra.mxu0 0.0
        %1551 = vmatprep.subr.mxu0 0.0
        %1552 = vmatpush1.msra.mxu0 0.0
        %1553 = vmatprep.subr.mxu0 0.0
        %1554 = vmatpush1.msra.mxu0 0.0
        %1555 = vmatprep.subr.mxu0 0.0
        %1556 = vmatpush1.msra.mxu0 0.0
        %1557 = vmatprep.subr.mxu0 0.0
        %1558 = vmatpush1.msra.mxu0 0.0
        %1559 = vmatprep.subr.mxu0 0.0
        %1560 = vmatpush1.msra.mxu0 0.0
        %1561 = vmatprep.subr.mxu0 0.0
        %1562 = vmatpush1.msra.mxu0 0.0
        %1563 = vmatprep.subr.mxu0 0.0
        %1564 = vmatpush1.msra.mxu0 0.0
        %1565 = vmatprep.subr.mxu0 0.0
        %1566 = vmatpush1.msra.mxu0 0.0
        %1567 = vmatprep.subr.mxu0 0.0
        %1568 = vmatpush1.msra.mxu0 0.0
        %1569 = vmatprep.subr.mxu0 0.0
        %1570 = vmatpush1.msra.mxu0 0.0
        %1571 = vmatprep.subr.mxu0 0.0
        %1572 = vmatpush1.msra.mxu0 0.0
        %1573 = vmatprep.subr.mxu0 0.0
        %1574 = vmatpush1.msra.mxu0 0.0
        %1575 = vmatprep.subr.mxu0 0.0
        %1576 = vmatpush1.msra.mxu0 0.0
        %1577 = vmatprep.subr.mxu0 0.0
        %1578 = vmatpush1.msra.mxu0 0.0
        %1579 = vmatprep.subr.mxu0 0.0
        %1580 = vmatpush1.msra.mxu0 0.0
        %1581 = vmatprep.subr.mxu0 0.0
        %1582 = vmatpush1.msra.mxu0 0.0
        %1583 = vmatprep.subr.mxu0 0.0
        %1584 = vmatpush1.msra.mxu0 0.0
        %1585 = vmatprep.mubr.f32.mxu0 0.0
        %1586 = vmatmul.mubr.f32.gmra.mrb[0].mxu0 %v1515
        %v1587 = vpop.f32.mrb[0].mxu0
        %v1588 = vadd.f32 0.0, %v1587
        %v1589 = vpop.f32.mrb[0].mxu0
        %v1590 = vadd.f32 0.0, %v1589
        %1591 = vdwg.mxu0
        %v1592 = vadd.f32 %v1474, %v1588
        %v1593 = vadd.f32 %v1476, %v1590
        %s1594 = scalar_lea.vmem %s6, 3
        %v1595 = vld [vmem:[%s1594] ss:$8 sm:$0x3]
        %v1597 = vlaneseq
        %v1598 = vshrl.u32 %v1597, 7
        %v1599 = vsub.s32 0, %v1598
        %v1600 = vrot.slane %v1595, %v1599
        %v1601 = vlaneseq
        %v1602 = vshrl.u32 %v1601, 7
        %v1603 = vsub.s32 1, %v1602
        %v1604 = vrot.slane %v1595, %v1603
        %v1605 = vcombine.low %v1600, %v1604
        %1606 = vrot.lane.b32.xlu0 %v1605, 125
        %v1607 = vpop.permute.xlu0 %1606
        %v1608 = vrot.slane %v1607, 4
        %vm1609 = vcmask 1022976
        %v1610 = vsel %vm1609, %v1608, %v1607
        %v1613 = vmul.f32 %v1272, %v1610
        %v1614 = vmul.f32 %v1273, %v1608
        %v1615 = vld [vmem:[#allocation8] sm:$0xff]
        %1617 = vrot.lane.b32.xlu0 %v1615, 116
        %v1618 = vpop.permute.xlu0 %1617
        %v1621 = vcombine.high %v1613, %v1613
        %1622 = vrot.lane.b32.xlu0 %v1613, 3
        %v1623 = vpop.permute.xlu0 %1622
        %1624 = vrot.lane.b32.xlu0 %v1621, 3
        %v1625 = vpop.permute.xlu0 %1624
        %1626 = vrot.lane.b32.xlu0 %v1614, 3
        %v1627 = vpop.permute.xlu0 %1626
        %vm1628 = vcmask 23552
        %v1629 = vsel %vm1628, %v1623, %v1625
        %v1630 = vsel %vm1628, %v1625, %v1627
        %v1631 = vsel %vm1310, %v1618, 0
        %v1633 = vsel %vm1313, %v1629, 0
        %v1635 = vsel %vm1313, %v1630, 0
        %1637 = vmatprep.subr.mxu0 %v1635
        %1638 = vmatpush1.msra.mxu0 %v1633
        %1639 = vmatprep.subr.mxu0 0.0
        %1640 = vmatpush1.msra.mxu0 0.0
        %1641 = vmatprep.subr.mxu0 0.0
        %1642 = vmatpush1.msra.mxu0 0.0
        %1643 = vmatprep.subr.mxu0 0.0
        %1644 = vmatpush1.msra.mxu0 0.0
        %1645 = vmatprep.subr.mxu0 0.0
        %1646 = vmatpush1.msra.mxu0 0.0
        %1647 = vmatprep.subr.mxu0 0.0
        %1648 = vmatpush1.msra.mxu0 0.0
        %1649 = vmatprep.subr.mxu0 0.0
        %1650 = vmatpush1.msra.mxu0 0.0
        %1651 = vmatprep.subr.mxu0 0.0
        %1652 = vmatpush1.msra.mxu0 0.0
        %1653 = vmatprep.subr.mxu0 0.0
        %1654 = vmatpush1.msra.mxu0 0.0
        %1655 = vmatprep.subr.mxu0 0.0
        %1656 = vmatpush1.msra.mxu0 0.0
        %1657 = vmatprep.subr.mxu0 0.0
        %1658 = vmatpush1.msra.mxu0 0.0
        %1659 = vmatprep.subr.mxu0 0.0
        %1660 = vmatpush1.msra.mxu0 0.0
        %1661 = vmatprep.subr.mxu0 0.0
        %1662 = vmatpush1.msra.mxu0 0.0
        %1663 = vmatprep.subr.mxu0 0.0
        %1664 = vmatpush1.msra.mxu0 0.0
        %1665 = vmatprep.subr.mxu0 0.0
        %1666 = vmatpush1.msra.mxu0 0.0
        %1667 = vmatprep.subr.mxu0 0.0
        %1668 = vmatpush1.msra.mxu0 0.0
        %1669 = vmatprep.subr.mxu0 0.0
        %1670 = vmatpush1.msra.mxu0 0.0
        %1671 = vmatprep.subr.mxu0 0.0
        %1672 = vmatpush1.msra.mxu0 0.0
        %1673 = vmatprep.subr.mxu0 0.0
        %1674 = vmatpush1.msra.mxu0 0.0
        %1675 = vmatprep.subr.mxu0 0.0
        %1676 = vmatpush1.msra.mxu0 0.0
        %1677 = vmatprep.subr.mxu0 0.0
        %1678 = vmatpush1.msra.mxu0 0.0
        %1679 = vmatprep.subr.mxu0 0.0
        %1680 = vmatpush1.msra.mxu0 0.0
        %1681 = vmatprep.subr.mxu0 0.0
        %1682 = vmatpush1.msra.mxu0 0.0
        %1683 = vmatprep.subr.mxu0 0.0
        %1684 = vmatpush1.msra.mxu0 0.0
        %1685 = vmatprep.subr.mxu0 0.0
        %1686 = vmatpush1.msra.mxu0 0.0
        %1687 = vmatprep.subr.mxu0 0.0
        %1688 = vmatpush1.msra.mxu0 0.0
        %1689 = vmatprep.subr.mxu0 0.0
        %1690 = vmatpush1.msra.mxu0 0.0
        %1691 = vmatprep.subr.mxu0 0.0
        %1692 = vmatpush1.msra.mxu0 0.0
        %1693 = vmatprep.subr.mxu0 0.0
        %1694 = vmatpush1.msra.mxu0 0.0
        %1695 = vmatprep.subr.mxu0 0.0
        %1696 = vmatpush1.msra.mxu0 0.0
        %1697 = vmatprep.subr.mxu0 0.0
        %1698 = vmatpush1.msra.mxu0 0.0
        %1699 = vmatprep.subr.mxu0 0.0
        %1700 = vmatpush1.msra.mxu0 0.0
        %1701 = vmatprep.mubr.f32.mxu0 0.0
        %1702 = vmatmul.mubr.f32.gmra.mrb[0].mxu0 %v1631
        %v1703 = vpop.f32.mrb[0].mxu0
        %v1704 = vadd.f32 0.0, %v1703
        %v1705 = vpop.f32.mrb[0].mxu0
        %v1706 = vadd.f32 0.0, %v1705
        %1707 = vdwg.mxu0
        %v1708 = vadd.f32 %v1592, %v1704
        %v1709 = vadd.f32 %v1593, %v1706
        %v1710 = vld [vmem:[#allocation8] sm:$0xff]
        %1712 = vrot.lane.b32.xlu0 %v1710, 112
        %v1713 = vpop.permute.xlu0 %1712
        %v1714 = vsel %vm1310, %v1713, 0
        %v1716 = vsel %vm1313, %v1300, 0
        %v1718 = vsel %vm1313, %v1273, 0
        %1720 = vmatprep.subr.mxu0 %v1718
        %1721 = vmatpush1.msra.mxu0 %v1716
        %1722 = vmatprep.subr.mxu0 0.0
        %1723 = vmatpush1.msra.mxu0 0.0
        %1724 = vmatprep.subr.mxu0 0.0
        %1725 = vmatpush1.msra.mxu0 0.0
        %1726 = vmatprep.subr.mxu0 0.0
        %1727 = vmatpush1.msra.mxu0 0.0
        %1728 = vmatprep.subr.mxu0 0.0
        %1729 = vmatpush1.msra.mxu0 0.0
        %1730 = vmatprep.subr.mxu0 0.0
        %1731 = vmatpush1.msra.mxu0 0.0
        %1732 = vmatprep.subr.mxu0 0.0
        %1733 = vmatpush1.msra.mxu0 0.0
        %1734 = vmatprep.subr.mxu0 0.0
        %1735 = vmatpush1.msra.mxu0 0.0
        %1736 = vmatprep.subr.mxu0 0.0
        %1737 = vmatpush1.msra.mxu0 0.0
        %1738 = vmatprep.subr.mxu0 0.0
        %1739 = vmatpush1.msra.mxu0 0.0
        %1740 = vmatprep.subr.mxu0 0.0
        %1741 = vmatpush1.msra.mxu0 0.0
        %1742 = vmatprep.subr.mxu0 0.0
        %1743 = vmatpush1.msra.mxu0 0.0
        %1744 = vmatprep.subr.mxu0 0.0
        %1745 = vmatpush1.msra.mxu0 0.0
        %1746 = vmatprep.subr.mxu0 0.0
        %1747 = vmatpush1.msra.mxu0 0.0
        %1748 = vmatprep.subr.mxu0 0.0
        %1749 = vmatpush1.msra.mxu0 0.0
        %1750 = vmatprep.subr.mxu0 0.0
        %1751 = vmatpush1.msra.mxu0 0.0
        %1752 = vmatprep.subr.mxu0 0.0
        %1753 = vmatpush1.msra.mxu0 0.0
        %1754 = vmatprep.subr.mxu0 0.0
        %1755 = vmatpush1.msra.mxu0 0.0
        %1756 = vmatprep.subr.mxu0 0.0
        %1757 = vmatpush1.msra.mxu0 0.0
        %1758 = vmatprep.subr.mxu0 0.0
        %1759 = vmatpush1.msra.mxu0 0.0
        %1760 = vmatprep.subr.mxu0 0.0
        %1761 = vmatpush1.msra.mxu0 0.0
        %1762 = vmatprep.subr.mxu0 0.0
        %1763 = vmatpush1.msra.mxu0 0.0
        %1764 = vmatprep.subr.mxu0 0.0
        %1765 = vmatpush1.msra.mxu0 0.0
        %1766 = vmatprep.subr.mxu0 0.0
        %1767 = vmatpush1.msra.mxu0 0.0
        %1768 = vmatprep.subr.mxu0 0.0
        %1769 = vmatpush1.msra.mxu0 0.0
        %1770 = vmatprep.subr.mxu0 0.0
        %1771 = vmatpush1.msra.mxu0 0.0
        %1772 = vmatprep.subr.mxu0 0.0
        %1773 = vmatpush1.msra.mxu0 0.0
        %1774 = vmatprep.subr.mxu0 0.0
        %1775 = vmatpush1.msra.mxu0 0.0
        %1776 = vmatprep.subr.mxu0 0.0
        %1777 = vmatpush1.msra.mxu0 0.0
        %1778 = vmatprep.subr.mxu0 0.0
        %1779 = vmatpush1.msra.mxu0 0.0
        %1780 = vmatprep.subr.mxu0 0.0
        %1781 = vmatpush1.msra.mxu0 0.0
        %1782 = vmatprep.subr.mxu0 0.0
        %1783 = vmatpush1.msra.mxu0 0.0
        %1784 = vmatprep.mubr.f32.mxu0 0.0
        %1785 = vmatmul.mubr.f32.gmra.mrb[0].mxu0 %v1714
        %v1786 = vpop.f32.mrb[0].mxu0
        %v1787 = vadd.f32 0.0, %v1786
        %v1788 = vpop.f32.mrb[0].mxu0
        %v1789 = vadd.f32 0.0, %v1788
        %1790 = vdwg.mxu0
        %v1791 = vadd.f32 %v1708, %v1787
        %v1792 = vadd.f32 %v1709, %v1789
        %s1793 = scalar_lea.vmem %s6, 5
        %v1794 = vld [vmem:[%s1793] ss:$8 sm:$0x3]
        %v1796 = vlaneseq
        %v1797 = vshrl.u32 %v1796, 7
        %v1798 = vsub.s32 0, %v1797
        %v1799 = vrot.slane %v1794, %v1798
        %v1800 = vlaneseq
        %v1801 = vshrl.u32 %v1800, 7
        %v1802 = vsub.s32 1, %v1801
        %v1803 = vrot.slane %v1794, %v1802
        %1804 = vrot.lane.b32.xlu0 %v1272, 125
        %v1805 = vpop.permute.xlu0 %1804
        %1806 = vrot.lane.b32.xlu0 %v1273, 125
        %v1807 = vpop.permute.xlu0 %1806
        %v1808 = vrot.slane %v1805, 4
        %v1809 = vrot.slane %v1807, 4
        %v1810 = vsel %vm1313, %v1808, %v1809
        %v1811 = vsel %vm1609, %v1810, %v1807
        %v1813 = vcombine.low %v1799, %v1803
        %v1815 = vmul.f32 %v1811, %v1813
        %v1816 = vld [vmem:[#allocation8] sm:$0xff]
        %1818 = vrot.lane.b32.xlu0 %v1816, 108
        %v1819 = vpop.permute.xlu0 %1818
        %v1821 = vcombine.high %v1815, %v1815
        %v1822 = vsel %vm1310, %v1819, 0
        %v1824 = vsel %vm1313, %v1815, 0
        %v1826 = vsel %vm1313, %v1821, 0
        %1828 = vmatprep.subr.mxu0 %v1826
        %1829 = vmatpush1.msra.mxu0 %v1824
        %1830 = vmatprep.subr.mxu0 0.0
        %1831 = vmatpush1.msra.mxu0 0.0
        %1832 = vmatprep.subr.mxu0 0.0
        %1833 = vmatpush1.msra.mxu0 0.0
        %1834 = vmatprep.subr.mxu0 0.0
        %1835 = vmatpush1.msra.mxu0 0.0
        %1836 = vmatprep.subr.mxu0 0.0
        %1837 = vmatpush1.msra.mxu0 0.0
        %1838 = vmatprep.subr.mxu0 0.0
        %1839 = vmatpush1.msra.mxu0 0.0
        %1840 = vmatprep.subr.mxu0 0.0
        %1841 = vmatpush1.msra.mxu0 0.0
        %1842 = vmatprep.subr.mxu0 0.0
        %1843 = vmatpush1.msra.mxu0 0.0
        %1844 = vmatprep.subr.mxu0 0.0
        %1845 = vmatpush1.msra.mxu0 0.0
        %1846 = vmatprep.subr.mxu0 0.0
        %1847 = vmatpush1.msra.mxu0 0.0
        %1848 = vmatprep.subr.mxu0 0.0
        %1849 = vmatpush1.msra.mxu0 0.0
        %1850 = vmatprep.subr.mxu0 0.0
        %1851 = vmatpush1.msra.mxu0 0.0
        %1852 = vmatprep.subr.mxu0 0.0
        %1853 = vmatpush1.msra.mxu0 0.0
        %1854 = vmatprep.subr.mxu0 0.0
        %1855 = vmatpush1.msra.mxu0 0.0
        %1856 = vmatprep.subr.mxu0 0.0
        %1857 = vmatpush1.msra.mxu0 0.0
        %1858 = vmatprep.subr.mxu0 0.0
        %1859 = vmatpush1.msra.mxu0 0.0
        %1860 = vmatprep.subr.mxu0 0.0
        %1861 = vmatpush1.msra.mxu0 0.0
        %1862 = vmatprep.subr.mxu0 0.0
        %1863 = vmatpush1.msra.mxu0 0.0
        %1864 = vmatprep.subr.mxu0 0.0
        %1865 = vmatpush1.msra.mxu0 0.0
        %1866 = vmatprep.subr.mxu0 0.0
        %1867 = vmatpush1.msra.mxu0 0.0
        %1868 = vmatprep.subr.mxu0 0.0
        %1869 = vmatpush1.msra.mxu0 0.0
        %1870 = vmatprep.subr.mxu0 0.0
        %1871 = vmatpush1.msra.mxu0 0.0
        %1872 = vmatprep.subr.mxu0 0.0
        %1873 = vmatpush1.msra.mxu0 0.0
        %1874 = vmatprep.subr.mxu0 0.0
        %1875 = vmatpush1.msra.mxu0 0.0
        %1876 = vmatprep.subr.mxu0 0.0
        %1877 = vmatpush1.msra.mxu0 0.0
        %1878 = vmatprep.subr.mxu0 0.0
        %1879 = vmatpush1.msra.mxu0 0.0
        %1880 = vmatprep.subr.mxu0 0.0
        %1881 = vmatpush1.msra.mxu0 0.0
        %1882 = vmatprep.subr.mxu0 0.0
        %1883 = vmatpush1.msra.mxu0 0.0
        %1884 = vmatprep.subr.mxu0 0.0
        %1885 = vmatpush1.msra.mxu0 0.0
        %1886 = vmatprep.subr.mxu0 0.0
        %1887 = vmatpush1.msra.mxu0 0.0
        %1888 = vmatprep.subr.mxu0 0.0
        %1889 = vmatpush1.msra.mxu0 0.0
        %1890 = vmatprep.subr.mxu0 0.0
        %1891 = vmatpush1.msra.mxu0 0.0
        %1892 = vmatprep.mubr.f32.mxu0 0.0
        %1893 = vmatmul.mubr.f32.gmra.mrb[0].mxu0 %v1822
        %v1894 = vpop.f32.mrb[0].mxu0
        %v1895 = vadd.f32 0.0, %v1894
        %v1896 = vpop.f32.mrb[0].mxu0
        %v1897 = vadd.f32 0.0, %v1896
        %1898 = vdwg.mxu0
        %v1899 = vadd.f32 %v1791, %v1895
        %v1900 = vadd.f32 %v1792, %v1897
        %s1901 = scalar_lea.vmem %s6, 6
        %v1902 = vld [vmem:[%s1901] ss:$8 sm:$0x3]
        %v1904 = vlaneseq
        %v1905 = vshrl.u32 %v1904, 7
        %v1906 = vsub.s32 0, %v1905
        %v1907 = vrot.slane %v1902, %v1906
        %v1908 = vlaneseq
        %v1909 = vshrl.u32 %v1908, 7
        %v1910 = vsub.s32 1, %v1909
        %v1911 = vrot.slane %v1902, %v1910
        %1912 = vrot.lane.b32.xlu0 %v1272, 83
        %v1913 = vpop.permute.xlu0 %1912
        %1914 = vrot.lane.b32.xlu0 %v1273, 83
        %v1915 = vpop.permute.xlu0 %1914
        %v1916 = vrot.slane %v1913, 4
        %v1917 = vrot.slane %v1915, 4
        %v1918 = vsel %vm1313, %v1916, %v1917
        %v1919 = vsel %vm1493, %v1918, %v1915
        %v1921 = vcombine.low %v1907, %v1911
        %v1923 = vmul.f32 %v1919, %v1921
        %v1924 = vld [vmem:[#allocation8] sm:$0xff]
        %1926 = vrot.lane.b32.xlu0 %v1924, 104
        %v1927 = vpop.permute.xlu0 %1926
        %v1929 = vcombine.high %v1923, %v1923
        %v1930 = vsel %vm1310, %v1927, 0
        %v1932 = vsel %vm1313, %v1923, 0
        %v1934 = vsel %vm1313, %v1929, 0
        %1936 = vmatprep.subr.mxu0 %v1934
        %1937 = vmatpush1.msra.mxu0 %v1932
        %1938 = vmatprep.subr.mxu0 0.0
        %1939 = vmatpush1.msra.mxu0 0.0
        %1940 = vmatprep.subr.mxu0 0.0
        %1941 = vmatpush1.msra.mxu0 0.0
        %1942 = vmatprep.subr.mxu0 0.0
        %1943 = vmatpush1.msra.mxu0 0.0
        %1944 = vmatprep.subr.mxu0 0.0
        %1945 = vmatpush1.msra.mxu0 0.0
        %1946 = vmatprep.subr.mxu0 0.0
        %1947 = vmatpush1.msra.mxu0 0.0
        %1948 = vmatprep.subr.mxu0 0.0
        %1949 = vmatpush1.msra.mxu0 0.0
        %1950 = vmatprep.subr.mxu0 0.0
        %1951 = vmatpush1.msra.mxu0 0.0
        %1952 = vmatprep.subr.mxu0 0.0
        %1953 = vmatpush1.msra.mxu0 0.0
        %1954 = vmatprep.subr.mxu0 0.0
        %1955 = vmatpush1.msra.mxu0 0.0
        %1956 = vmatprep.subr.mxu0 0.0
        %1957 = vmatpush1.msra.mxu0 0.0
        %1958 = vmatprep.subr.mxu0 0.0
        %1959 = vmatpush1.msra.mxu0 0.0
        %1960 = vmatprep.subr.mxu0 0.0
        %1961 = vmatpush1.msra.mxu0 0.0
        %1962 = vmatprep.subr.mxu0 0.0
        %1963 = vmatpush1.msra.mxu0 0.0
        %1964 = vmatprep.subr.mxu0 0.0
        %1965 = vmatpush1.msra.mxu0 0.0
        %1966 = vmatprep.subr.mxu0 0.0
        %1967 = vmatpush1.msra.mxu0 0.0
        %1968 = vmatprep.subr.mxu0 0.0
        %1969 = vmatpush1.msra.mxu0 0.0
        %1970 = vmatprep.subr.mxu0 0.0
        %1971 = vmatpush1.msra.mxu0 0.0
        %1972 = vmatprep.subr.mxu0 0.0
        %1973 = vmatpush1.msra.mxu0 0.0
        %1974 = vmatprep.subr.mxu0 0.0
        %1975 = vmatpush1.msra.mxu0 0.0
        %1976 = vmatprep.subr.mxu0 0.0
        %1977 = vmatpush1.msra.mxu0 0.0
        %1978 = vmatprep.subr.mxu0 0.0
        %1979 = vmatpush1.msra.mxu0 0.0
        %1980 = vmatprep.subr.mxu0 0.0
        %1981 = vmatpush1.msra.mxu0 0.0
        %1982 = vmatprep.subr.mxu0 0.0
        %1983 = vmatpush1.msra.mxu0 0.0
        %1984 = vmatprep.subr.mxu0 0.0
        %1985 = vmatpush1.msra.mxu0 0.0
        %1986 = vmatprep.subr.mxu0 0.0
        %1987 = vmatpush1.msra.mxu0 0.0
        %1988 = vmatprep.subr.mxu0 0.0
        %1989 = vmatpush1.msra.mxu0 0.0
        %1990 = vmatprep.subr.mxu0 0.0
        %1991 = vmatpush1.msra.mxu0 0.0
        %1992 = vmatprep.subr.mxu0 0.0
        %1993 = vmatpush1.msra.mxu0 0.0
        %1994 = vmatprep.subr.mxu0 0.0
        %1995 = vmatpush1.msra.mxu0 0.0
        %1996 = vmatprep.subr.mxu0 0.0
        %1997 = vmatpush1.msra.mxu0 0.0
        %1998 = vmatprep.subr.mxu0 0.0
        %1999 = vmatpush1.msra.mxu0 0.0
        %2000 = vmatprep.mubr.f32.mxu0 0.0
        %2001 = vmatmul.mubr.f32.gmra.mrb[0].mxu0 %v1930
        %v2002 = vpop.f32.mrb[0].mxu0
        %v2003 = vadd.f32 0.0, %v2002
        %v2004 = vpop.f32.mrb[0].mxu0
        %v2005 = vadd.f32 0.0, %v2004
        %2006 = vdwg.mxu0
        %v2007 = vadd.f32 %v1899, %v2003
        %v2008 = vadd.f32 %v1900, %v2005
        %v2009 = vld [vmem:[#allocation8] sm:$0xff]
        %2011 = vrot.lane.b32.xlu0 %v2009, 100
        %v2012 = vpop.permute.xlu0 %2011
        %v2013 = vcombine.high %v1273, %v1273
        %2014 = vrot.lane.b32.xlu0 %v1300, 80
        %v2015 = vpop.permute.xlu0 %2014
        %2016 = vrot.lane.b32.xlu0 %v1273, 80
        %v2017 = vpop.permute.xlu0 %2016
        %2018 = vrot.lane.b32.xlu0 %v2013, 80
        %v2019 = vpop.permute.xlu0 %2018
        %vm2020 = vcmask 654336
        %v2021 = vsel %vm2020, %v2015, %v2017
        %v2022 = vsel %vm2020, %v2017, %v2019
        %v2023 = vsel %vm1310, %v2012, 0
        %v2025 = vsel %vm1313, %v2021, 0
        %v2027 = vsel %vm1313, %v2022, 0
        %2029 = vmatprep.subr.mxu0 %v2027
        %2030 = vmatpush1.msra.mxu0 %v2025
        %2031 = vmatprep.subr.mxu0 0.0
        %2032 = vmatpush1.msra.mxu0 0.0
        %2033 = vmatprep.subr.mxu0 0.0
        %2034 = vmatpush1.msra.mxu0 0.0
        %2035 = vmatprep.subr.mxu0 0.0
        %2036 = vmatpush1.msra.mxu0 0.0
        %2037 = vmatprep.subr.mxu0 0.0
        %2038 = vmatpush1.msra.mxu0 0.0
        %2039 = vmatprep.subr.mxu0 0.0
        %2040 = vmatpush1.msra.mxu0 0.0
        %2041 = vmatprep.subr.mxu0 0.0
        %2042 = vmatpush1.msra.mxu0 0.0
        %2043 = vmatprep.subr.mxu0 0.0
        %2044 = vmatpush1.msra.mxu0 0.0
        %2045 = vmatprep.subr.mxu0 0.0
        %2046 = vmatpush1.msra.mxu0 0.0
        %2047 = vmatprep.subr.mxu0 0.0
        %2048 = vmatpush1.msra.mxu0 0.0
        %2049 = vmatprep.subr.mxu0 0.0
        %2050 = vmatpush1.msra.mxu0 0.0
        %2051 = vmatprep.subr.mxu0 0.0
        %2052 = vmatpush1.msra.mxu0 0.0
        %2053 = vmatprep.subr.mxu0 0.0
        %2054 = vmatpush1.msra.mxu0 0.0
        %2055 = vmatprep.subr.mxu0 0.0
        %2056 = vmatpush1.msra.mxu0 0.0
        %2057 = vmatprep.subr.mxu0 0.0
        %2058 = vmatpush1.msra.mxu0 0.0
        %2059 = vmatprep.subr.mxu0 0.0
        %2060 = vmatpush1.msra.mxu0 0.0
        %2061 = vmatprep.subr.mxu0 0.0
        %2062 = vmatpush1.msra.mxu0 0.0
        %2063 = vmatprep.subr.mxu0 0.0
        %2064 = vmatpush1.msra.mxu0 0.0
        %2065 = vmatprep.subr.mxu0 0.0
        %2066 = vmatpush1.msra.mxu0 0.0
        %2067 = vmatprep.subr.mxu0 0.0
        %2068 = vmatpush1.msra.mxu0 0.0
        %2069 = vmatprep.subr.mxu0 0.0
        %2070 = vmatpush1.msra.mxu0 0.0
        %2071 = vmatprep.subr.mxu0 0.0
        %2072 = vmatpush1.msra.mxu0 0.0
        %2073 = vmatprep.subr.mxu0 0.0
        %2074 = vmatpush1.msra.mxu0 0.0
        %2075 = vmatprep.subr.mxu0 0.0
        %2076 = vmatpush1.msra.mxu0 0.0
        %2077 = vmatprep.subr.mxu0 0.0
        %2078 = vmatpush1.msra.mxu0 0.0
        %2079 = vmatprep.subr.mxu0 0.0
        %2080 = vmatpush1.msra.mxu0 0.0
        %2081 = vmatprep.subr.mxu0 0.0
        %2082 = vmatpush1.msra.mxu0 0.0
        %2083 = vmatprep.subr.mxu0 0.0
        %2084 = vmatpush1.msra.mxu0 0.0
        %2085 = vmatprep.subr.mxu0 0.0
        %2086 = vmatpush1.msra.mxu0 0.0
        %2087 = vmatprep.subr.mxu0 0.0
        %2088 = vmatpush1.msra.mxu0 0.0
        %2089 = vmatprep.subr.mxu0 0.0
        %2090 = vmatpush1.msra.mxu0 0.0
        %2091 = vmatprep.subr.mxu0 0.0
        %2092 = vmatpush1.msra.mxu0 0.0
        %2093 = vmatprep.mubr.f32.mxu0 0.0
        %2094 = vmatmul.mubr.f32.gmra.mrb[0].mxu0 %v2023
        %v2095 = vpop.f32.mrb[0].mxu0
        %v2096 = vadd.f32 0.0, %v2095
        %v2097 = vpop.f32.mrb[0].mxu0
        %v2098 = vadd.f32 0.0, %v2097
        %2099 = vdwg.mxu0
        %v2100 = vadd.f32 %v2007, %v2096
        %v2101 = vadd.f32 %v2008, %v2098
        %s2102 = scalar_lea.vmem %s6, 16
        %v2103 = vld [vmem:[%s2102] ss:$8 sm:$0x3]
        %v2105 = vlaneseq
        %v2106 = vshrl.u32 %v2105, 7
        %v2107 = vsub.s32 0, %v2106
        %v2108 = vrot.slane %v2103, %v2107
        %v2109 = vlaneseq
        %v2110 = vshrl.u32 %v2109, 7
        %v2111 = vsub.s32 1, %v2110
        %v2112 = vrot.slane %v2103, %v2111
        %2113 = vrot.lane.b32.xlu0 %v1272, 77
        %v2114 = vpop.permute.xlu0 %2113
        %2115 = vrot.lane.b32.xlu0 %v1273, 77
        %v2116 = vpop.permute.xlu0 %2115
        %v2117 = vrot.slane %v2114, 4
        %v2118 = vrot.slane %v2116, 4
        %v2119 = vsel %vm1313, %v2117, %v2118
        %v2120 = vsel %vm1288, %v2119, %v2116
        %v2122 = vcombine.low %v2108, %v2112
        %v2124 = vmul.f32 %v2120, %v2122
        %v2125 = vld [vmem:[#allocation8] sm:$0xff]
        %2127 = vrot.lane.b32.xlu0 %v2125, 96
        %v2128 = vpop.permute.xlu0 %2127
        %v2130 = vcombine.high %v2124, %v2124
        %v2131 = vsel %vm1310, %v2128, 0
        %v2133 = vsel %vm1313, %v2124, 0
        %v2135 = vsel %vm1313, %v2130, 0
        %2137 = vmatprep.subr.mxu0 %v2135
        %2138 = vmatpush1.msra.mxu0 %v2133
        %2139 = vmatprep.subr.mxu0 0.0
        %2140 = vmatpush1.msra.mxu0 0.0
        %2141 = vmatprep.subr.mxu0 0.0
        %2142 = vmatpush1.msra.mxu0 0.0
        %2143 = vmatprep.subr.mxu0 0.0
        %2144 = vmatpush1.msra.mxu0 0.0
        %2145 = vmatprep.subr.mxu0 0.0
        %2146 = vmatpush1.msra.mxu0 0.0
        %2147 = vmatprep.subr.mxu0 0.0
        %2148 = vmatpush1.msra.mxu0 0.0
        %2149 = vmatprep.subr.mxu0 0.0
        %2150 = vmatpush1.msra.mxu0 0.0
        %2151 = vmatprep.subr.mxu0 0.0
        %2152 = vmatpush1.msra.mxu0 0.0
        %2153 = vmatprep.subr.mxu0 0.0
        %2154 = vmatpush1.msra.mxu0 0.0
        %2155 = vmatprep.subr.mxu0 0.0
        %2156 = vmatpush1.msra.mxu0 0.0
        %2157 = vmatprep.subr.mxu0 0.0
        %2158 = vmatpush1.msra.mxu0 0.0
        %2159 = vmatprep.subr.mxu0 0.0
        %2160 = vmatpush1.msra.mxu0 0.0
        %2161 = vmatprep.subr.mxu0 0.0
        %2162 = vmatpush1.msra.mxu0 0.0
        %2163 = vmatprep.subr.mxu0 0.0
        %2164 = vmatpush1.msra.mxu0 0.0
        %2165 = vmatprep.subr.mxu0 0.0
        %2166 = vmatpush1.msra.mxu0 0.0
        %2167 = vmatprep.subr.mxu0 0.0
        %2168 = vmatpush1.msra.mxu0 0.0
        %2169 = vmatprep.subr.mxu0 0.0
        %2170 = vmatpush1.msra.mxu0 0.0
        %2171 = vmatprep.subr.mxu0 0.0
        %2172 = vmatpush1.msra.mxu0 0.0
        %2173 = vmatprep.subr.mxu0 0.0
        %2174 = vmatpush1.msra.mxu0 0.0
        %2175 = vmatprep.subr.mxu0 0.0
        %2176 = vmatpush1.msra.mxu0 0.0
        %2177 = vmatprep.subr.mxu0 0.0
        %2178 = vmatpush1.msra.mxu0 0.0
        %2179 = vmatprep.subr.mxu0 0.0
        %2180 = vmatpush1.msra.mxu0 0.0
        %2181 = vmatprep.subr.mxu0 0.0
        %2182 = vmatpush1.msra.mxu0 0.0
        %2183 = vmatprep.subr.mxu0 0.0
        %2184 = vmatpush1.msra.mxu0 0.0
        %2185 = vmatprep.subr.mxu0 0.0
        %2186 = vmatpush1.msra.mxu0 0.0
        %2187 = vmatprep.subr.mxu0 0.0
        %2188 = vmatpush1.msra.mxu0 0.0
        %2189 = vmatprep.subr.mxu0 0.0
        %2190 = vmatpush1.msra.mxu0 0.0
        %2191 = vmatprep.subr.mxu0 0.0
        %2192 = vmatpush1.msra.mxu0 0.0
        %2193 = vmatprep.subr.mxu0 0.0
        %2194 = vmatpush1.msra.mxu0 0.0
        %2195 = vmatprep.subr.mxu0 0.0
        %2196 = vmatpush1.msra.mxu0 0.0
        %2197 = vmatprep.subr.mxu0 0.0
        %2198 = vmatpush1.msra.mxu0 0.0
        %2199 = vmatprep.subr.mxu0 0.0
        %2200 = vmatpush1.msra.mxu0 0.0
        %2201 = vmatprep.mubr.f32.mxu0 0.0
        %2202 = vmatmul.mubr.f32.gmra.mrb[0].mxu0 %v2131
        %v2203 = vpop.f32.mrb[0].mxu0
        %v2204 = vadd.f32 0.0, %v2203
        %v2205 = vpop.f32.mrb[0].mxu0
        %v2206 = vadd.f32 0.0, %v2205
        %2207 = vdwg.mxu0
        %v2208 = vadd.f32 %v2100, %v2204
        %v2209 = vadd.f32 %v2101, %v2206
        %v2210 = vld [vmem:[%s5] sm:$0xff]
        %2212 = vset.pattern.permute.xlu0 0
        %2213 = vperm.xlu0 %2212, %v2210
        %v2214 = vpop.permute.xlu0 %2213
        %v2216 = vadd.f32 %v2208, %v2214
        %v2217 = vadd.f32 %v2209, %v2214
        %v2218 = vadd.f32 %v2216, %v325
        %v2219 = vadd.f32 %v2217, %v326
        %v2220 = vxor.u32 %v2218, 2147483648
        %v2221 = vxor.u32 %v2219, 2147483648
        %v2222 = vmul.f32 %v2220, 1.442695
        %v2223 = vpow.pop %v2222
        %v2224 = vmul.f32 %v2221, 1.442695
        %v2225 = vpow.pop %v2224
        %v2226 = vadd.f32 %v2223, 1.0
        %v2227 = vadd.f32 %v2225, 1.0
        %v2228 = vrcp.pop %v2226
        %v2229 = vmul.f32 1.0, %v2228
        %v2230 = vrcp.pop %v2227
        %v2231 = vmul.f32 1.0, %v2230
        %v2232 = vmul.f32 %v2218, %v2229
        %v2233 = vmul.f32 %v2219, %v2231
        %2234 = vst [vmem:[%s321] sm:$0xff] %v2232
        %2235 = vst [vmem:[%s321 + $0x8] sm:$0xff] %v2233
        %s2236 = sand.u32 %s185, 1
        %s2237 = scalar_lea.sflag [#allocation5], %s2236
        %s2238 = sand.u32 %s185, 1
        %s2239 = smul.addr %s2238, 16
        %s2240 = scalar_lea.vmem [#allocation9], %s2239
        // Predicated region
        $region61: #{tpu_custom_call.1} parent=47 // pred_check
          %p2241 = pneg %p195
        $region62: #{tpu_custom_call.1} parent=47 // pred_check_branch
          %2243 = sbr.rel (%p2241) target = $region64
        $region63: #{tpu_custom_call.1} parent=47 // pred_region
          %s2245 = ssub.s32 256, 256
          %2246 = vsyncadd %s2237, %s2245
          %s2247 = smul.addr %s25, 2
          %s2248 = smul.addr %s2247, 128
          %s2249 = scalar_lea.hbm %s7, %s2248
          %s2251 = sshll.u32 %s2240, 4
          %s2252 = int_to_ptr.vmem [resolvable:$true] %s2251
          %2254 = dma.vmem_to_hbm [thread:$0]  %s2252, 256, %s2249, %s2237
        $region64: #{tpu_custom_call.1} parent=47 // pred_fallthru
          _
      $region48: #{tpu_custom_call.1} parent=5 // pred_fallthru
        _
      %p2255 = scmp.le.s32.totalorder 2, %s20
      // Predicated region
      $region65: #{tpu_custom_call.1} parent=5 // pred_check
        %p2256 = pneg %p2255
      $region66: #{tpu_custom_call.1} parent=5 // pred_check_branch
        %2258 = sbr.rel (%p2256) target = $region68
      $region67: #{tpu_custom_call.1} parent=5 // pred_region
        %s2259 = ssub.s32 %s20, 2
        // Predicated region
        $region69: #{tpu_custom_call.1} parent=67 // pred_check
          %p2260 = pneg %p201
        $region70: #{tpu_custom_call.1} parent=67 // pred_check_branch
          %2262 = sbr.rel (%p2260) target = $region72
        $region71: #{tpu_custom_call.1} parent=67 // pred_region
          %s2263 = sand.u32 %s186, 1
          %s2264 = scalar_lea.sflag [#allocation5], %s2263
          %s2265 = sand.u32 %s186, 1
          %s2266 = smul.addr %s2265, 16
          %s2267 = scalar_lea.vmem [#allocation9], %s2266
          %2268 = dma.done %s2264, 256
        $region72: #{tpu_custom_call.1} parent=67 // pred_fallthru
          _
      $region68: #{tpu_custom_call.1} parent=5 // pred_fallthru
        _
    $region6: #{tpu_custom_call.1} parent=1 // loop_footer
      %s24 = sadd.s32 1, %s20
    $region7: #{tpu_custom_call.1} parent=1 // loop_footer_branch
      %19 = sbr.rel target = $region3
    $region8: #{tpu_custom_call.1} parent=1 // loop_exit
      _
    %2269 = vsyncpa [#allocation4], 1
    %s2270 = scalar_lea.sflag [#allocation4], 1
    %2271 = vsyncpa %s2270, 1
    %2272 = vsyncpa [#allocation7], 1
    %2273 = vsyncpa [#allocation5], 1
    %s2274 = scalar_lea.sflag [#allocation5], 1
    %2275 = vsyncpa %s2274, 1

</llo_original>
